<compile_context>
chip_gen: v6e
topology: v6e:2x2x1
jax: 0.10.0
libtpu: 0.0.40
codegen_flags: <defaults>
</compile_context>

<pallas_src>
import functools
import math

import jax
import jax.numpy as jnp
from jax.experimental import pallas as pl
from jax.experimental.pallas import tpu as pltpu


# ----------------------------- Pallas kernel --------------------------------
def fused_encoder_kernel(x_ref, wqkv_ref, bqkv_ref, wo_ref, bo_ref,
                         g1_ref, be1_ref, w1_ref, b1_ref, w2_ref,
                         b2_ref, g2_ref, be2_ref, o_ref,
                         x_vmem, ff_acc, *, num_heads):
    """grid = (layer, ff_tile).  The running activation lives in x_vmem across all grid steps.

    Block shapes:
      x_ref    : (B, S, D)            original input (read once at layer 0)
      wqkv_ref : (1, D, 3D)  bf16/f32 fused QKV weights, head-major columns, Q pre-scaled
      bqkv_ref : (1, 1, 3D)  f32
      wo_ref   : (1, D, D)            output projection (rows head-major)
      bo/g1/be1/b2/g2/be2 : (1, 1, D) f32
      w1_ref   : (1, D, TF)           FFN up   (F-tiled)
      b1_ref   : (1, 1, TF)  f32
      w2_ref   : (1, TF, D)           FFN down (F-tiled)
      o_ref    : (B, S, D)            output (stored only on the final grid step)
      x_vmem   : (B*S, D) f32         resident activation scratch
      ff_acc   : (B*S, D) f32         FFN partial-sum accumulator
    """
    l = pl.program_id(0)
    f = pl.program_id(1)
    nl = pl.num_programs(0)
    nf = pl.num_programs(1)

    B, S, D = x_ref.shape
    H = num_heads
    hd = D // H
    BS = B * S
    cdt = wqkv_ref.dtype                     # MXU input dtype (bf16 or f32)

    def layer_norm(t, g, b):
        # fused single-pass statistics: E[x], E[x^2]  (biased variance, eps=1e-5, like nn.LayerNorm)
        mu = jnp.mean(t, axis=-1, keepdims=True)
        ms = jnp.mean(t * t, axis=-1, keepdims=True)
        var = ms - mu * mu
        return (t - mu) * jax.lax.rsqrt(var + 1e-5) * g + b

    # ---- one-time load of the input activation ------------------------------
    @pl.when(jnp.logical_and(l == 0, f == 0))
    def _():
        x_vmem[...] = x_ref[...].reshape(BS, D).astype(jnp.float32)

    # ---- attention + residual + LayerNorm1 (once per layer, at ff-tile 0) ---
    @pl.when(f == 0)
    def _():
        xres = x_vmem[...]                                            # (BS, D) f32

        # Dense, full-width QKV projection: (BS, D) @ (D, 3D).  1/sqrt(hd) is folded into Q.
        qkv = jnp.dot(xres.astype(cdt), wqkv_ref[0],
                      preferred_element_type=jnp.float32) + bqkv_ref[0]   # (BS, 3D) f32

        def heads(col0):
            # (BS, 3D) -> (H*B, S, hd) via static lane slices + leading-axis stack
            hs = [qkv[:, col0 + h * hd: col0 + (h + 1) * hd].reshape(B, S, hd)
                  for h in range(H)]
            return jnp.stack(hs, axis=0).reshape(H * B, S, hd)

        q = heads(0).astype(cdt)
        k = heads(D).astype(cdt)
        v = heads(2 * D).astype(cdt)

        logits = jnp.einsum('gsd,gtd->gst', q, k,
                            preferred_element_type=jnp.float32)          # (G, S, S) f32
        m = jnp.max(logits, axis=-1, keepdims=True)
        p = jnp.exp(logits - m)
        attn = p * pl.reciprocal(jnp.sum(p, axis=-1, keepdims=True), approx=True)
        vals = jnp.einsum('gst,gtd->gsd', attn.astype(cdt), v,
                          preferred_element_type=jnp.float32)             # (G, S, hd) f32

        # Head merge on the lane axis, then ONE dense (BS, D) @ (D, D) output projection.
        v4 = vals.reshape(H, B, S, hd)
        vals2 = jnp.concatenate([v4[h].reshape(BS, hd) for h in range(H)], axis=-1)  # (BS, D)
        attn_out = jnp.dot(vals2.astype(cdt), wo_ref[0],
                           preferred_element_type=jnp.float32) + bo_ref[0]

        y = layer_norm(xres + attn_out, g1_ref[0], be1_ref[0])
        x_vmem[...] = y                       # post-LN1 activation = FFN input & residual
        ff_acc[...] = jnp.zeros_like(ff_acc)

    # ---- FFN partial for the current F tile (every grid step) ---------------
    y = x_vmem[...]
    h1 = jnp.maximum(jnp.dot(y.astype(cdt), w1_ref[0],
                             preferred_element_type=jnp.float32) + b1_ref[0], 0.0)
    ff_acc[...] += jnp.dot(h1.astype(cdt), w2_ref[0],
                           preferred_element_type=jnp.float32)

    # ---- residual + LayerNorm2 (once per layer, at the last ff tile) --------
    @pl.when(f == nf - 1)
    def _():
        z = layer_norm(x_vmem[...] + ff_acc[...] + b2_ref[0], g2_ref[0], be2_ref[0])
        x_vmem[...] = z

    # ---- HBM writeback only on the very last grid step -----------------------
    @pl.when(jnp.logical_and(f == nf - 1, l == nl - 1))
    def _():
        o_ref[...] = x_vmem[...].reshape(B, S, D).astype(o_ref.dtype)


# ----------------------------- wrapper ---------------------------------------
_PARAM_ORDER = ["wqkv", "bqkv", "wo", "bo", "g1", "be1",
                "w1", "b1", "w2", "b2", "g2", "be2"]


def _prep_params(layer_params, num_heads, param_dtype):
    """Head-major column layout for QKV, fold 1/sqrt(hd) into Q, cast matmul weights to
    param_dtype (bf16), keep biases / LayerNorm affine params in f32, stack over layers."""
    D = layer_params[0]["wo"].shape[0]
    H = num_heads
    hd = D // H
    scale = 1.0 / math.sqrt(hd)

    def one(p):
        w = p["wqkv"].reshape(D, H, 3, hd)          # columns: (head, q|k|v, dim)
        b = p["bqkv"].reshape(H, 3, hd)
        wq = (w[:, :, 0, :] * scale).reshape(D, D)  # head-major columns
        wk = w[:, :, 1, :].reshape(D, D)
        wv = w[:, :, 2, :].reshape(D, D)
        bq = (b[:, 0, :] * scale).reshape(1, D)
        bk = b[:, 1, :].reshape(1, D)
        bv = b[:, 2, :].reshape(1, D)
        return {
            "wqkv": jnp.concatenate([wq, wk, wv], axis=1).astype(param_dtype),  # (D, 3D)
            "bqkv": jnp.concatenate([bq, bk, bv], axis=1).astype(jnp.float32),  # (1, 3D)
            "wo": p["wo"].astype(param_dtype),
            "bo": p["bo"].astype(jnp.float32),
            "g1": p["g1"].astype(jnp.float32), "be1": p["be1"].astype(jnp.float32),
            "w1": p["w1"].astype(param_dtype), "b1": p["b1"].astype(jnp.float32),
            "w2": p["w2"].astype(param_dtype), "b2": p["b2"].astype(jnp.float32),
            "g2": p["g2"].astype(jnp.float32), "be2": p["be2"].astype(jnp.float32),
        }

    per = [one(p) for p in layer_params]
    return {n: jnp.stack([pp[n] for pp in per], axis=0) for n in _PARAM_ORDER}


def transformer_encoder_pallas(x, layer_params, *, num_heads,
                               param_dtype=jnp.bfloat16, ff_tile=None):
    """Full TransformerEncoder forward (mask=None, eval/dropout=0) in a single pallas_call."""
    B, S, D = x.shape
    L = len(layer_params)
    F = layer_params[0]["w1"].shape[1]
    assert D % num_heads == 0

    if ff_tile is None:
        ff_tile = F if F <= 512 else 512        # 512 = multiple of 256 (v6e/v7x MXU) and 128 (v5e)
    assert F % ff_tile == 0
    nf = F // ff_tile

    stacked = _prep_params(layer_params, num_heads, param_dtype)

    const = lambda l, f: (l, 0, 0)
    in_specs = [
        pl.BlockSpec((B, S, D), lambda l, f: (0, 0, 0)),         # x (read once at l==0)
        pl.BlockSpec((1, D, 3 * D), const),                      # wqkv
        pl.BlockSpec((1, 1, 3 * D), const),                      # bqkv
        pl.BlockSpec((1, D, D), const),                          # wo
        pl.BlockSpec((1, 1, D), const),                          # bo
        pl.BlockSpec((1, 1, D), const),                          # g1
        pl.BlockSpec((1, 1, D), const),                          # be1
        pl.BlockSpec((1, D, ff_tile), lambda l, f: (l, 0, f)),   # w1 (F-tiled)
        pl.BlockSpec((1, 1, ff_tile), lambda l, f: (l, 0, f)),   # b1
        pl.BlockSpec((1, ff_tile, D), lambda l, f: (l, f, 0)),   # w2 (F-tiled)
        pl.BlockSpec((1, 1, D), const),                          # b2
        pl.BlockSpec((1, 1, D), const),                          # g2
        pl.BlockSpec((1, 1, D), const),                          # be2
    ]

    kernel = functools.partial(fused_encoder_kernel, num_heads=num_heads)

    return pl.pallas_call(
        kernel,
        out_shape=jax.ShapeDtypeStruct((B, S, D), x.dtype),
        grid_spec=pltpu.PrefetchScalarGridSpec(
            num_scalar_prefetch=0,
            grid=(L, nf),                                        # layers x FFN reduction tiles
            in_specs=in_specs,
            out_specs=pl.BlockSpec((B, S, D), lambda l, f: (0, 0, 0)),
            scratch_shapes=[pltpu.VMEM((B * S, D), jnp.float32),   # resident activation
                            pltpu.VMEM((B * S, D), jnp.float32)],  # FFN accumulator
        ),
        compiler_params=pltpu.CompilerParams(
            dimension_semantics=("arbitrary", "arbitrary"),        # both axes carry state
            vmem_limit_bytes=64 * 1024 * 1024),
    )(x, *[stacked[n] for n in _PARAM_ORDER])


# ----------------------------- pure-JAX reference ----------------------------
def encoder_block_ref(x, p, *, num_heads):
    B, S, D = x.shape
    hd = D // num_heads
    qkv = x @ p["wqkv"] + p["bqkv"][0]
    qkv = qkv.reshape(B, S, num_heads, 3 * hd).transpose(0, 2, 1, 3)
    q, k, v = qkv[..., :hd], qkv[..., hd:2 * hd], qkv[..., 2 * hd:]
    logits = jnp.einsum("bhqd,bhkd->bhqk", q, k) / math.sqrt(hd)
    attn = jax.nn.softmax(logits, axis=-1)
    vals = jnp.einsum("bhqk,bhkd->bhqd", attn, v).transpose(0, 2, 1, 3).reshape(B, S, D)
    attn_out = vals @ p["wo"] + p["bo"][0]
    x = x + attn_out
    x = (x - x.mean(-1, keepdims=True)) * jax.lax.rsqrt(x.var(-1, keepdims=True) + 1e-5) \
        * p["g1"][0] + p["be1"][0]
    ff = jnp.maximum(x @ p["w1"] + p["b1"][0], 0.0) @ p["w2"] + p["b2"][0]
    x = x + ff
    x = (x - x.mean(-1, keepdims=True)) * jax.lax.rsqrt(x.var(-1, keepdims=True) + 1e-5) \
        * p["g2"][0] + p["be2"][0]
    return x


# ----------------------------- parameter init --------------------------------
def xavier_uniform(key, shape):
    fan_in, fan_out = shape[0], shape[1]
    bound = math.sqrt(6.0 / (fan_in + fan_out))
    return jax.random.uniform(key, shape, jnp.float32, -bound, bound)


def init_layer(key, input_dim, dim_feedforward):
    D, F = input_dim, dim_feedforward
    ks = jax.random.split(key, 12)
    nrm = lambda k, s: 0.1 * jax.random.normal(k, s, jnp.float32)
    return {
        "wqkv": xavier_uniform(ks[0], (D, 3 * D)),
        "bqkv": nrm(ks[1], (1, 3 * D)),
        "wo": xavier_uniform(ks[2], (D, D)),
        "bo": nrm(ks[3], (1, D)),
        "g1": 1.0 + nrm(ks[4], (1, D)),
        "be1": nrm(ks[5], (1, D)),
        "w1": xavier_uniform(ks[6], (D, F)),
        "b1": nrm(ks[7], (1, F)),
        "w2": xavier_uniform(ks[8], (F, D)),
        "b2": nrm(ks[9], (1, D)),
        "g2": 1.0 + nrm(ks[10], (1, D)),
        "be2": nrm(ks[11], (1, D)),
    }


# ----------------------------------- main -------------------------------------
if __name__ == "__main__":
    B, S, D = 2, 8, 32          # batch, seq_len, input_dim (== embed_dim)
    num_heads = 4
    dim_feedforward = 64
    num_layers = 2

    key = jax.random.PRNGKey(0)
    kx, *klayers = jax.random.split(key, num_layers + 1)
    x = jax.random.normal(kx, (B, S, D), jnp.float32)
    layer_params = [init_layer(k, D, dim_feedforward) for k in klayers]

    # pure-JAX reference
    ref = x
    for p in layer_params:
        ref = encoder_block_ref(ref, p, num_heads=num_heads)

    # f32-weight run: numerical parity with the reference (approx-reciprocal softmax only).
    out_f32 = jax.block_until_ready(
        transformer_encoder_pallas(x, layer_params, num_heads=num_heads,
                                   param_dtype=jnp.float32))
    err_f32 = float(jnp.max(jnp.abs(out_f32 - ref)))
    assert err_f32 < 5e-3, f"f32 mismatch vs reference: max|diff|={err_f32}"

    # bf16-weight run (deployment config): looser tolerance for bf16 matmul rounding.
    out_bf16 = jax.block_until_ready(
        transformer_encoder_pallas(x, layer_params, num_heads=num_heads,
                                   param_dtype=jnp.bfloat16))
    err_bf16 = float(jnp.max(jnp.abs(out_bf16 - ref)))
    assert err_bf16 < 1e-1, f"bf16 mismatch vs reference: max|diff|={err_bf16}"

    print("KERNEL_OK")
</pallas_src>

<mosaic_0001>
module attributes {stable_mosaic.version = 11 : i64} {
  func.func @fused_encoder_kernel(%arg0: i32, %arg1: i32, %arg2: memref<2x8x32xf32, #tpu.memory_space<vmem>>, %arg3: memref<1x32x96xf32, #tpu.memory_space<vmem>>, %arg4: memref<1x1x96xf32, #tpu.memory_space<vmem>>, %arg5: memref<1x32x32xf32, #tpu.memory_space<vmem>>, %arg6: memref<1x1x32xf32, #tpu.memory_space<vmem>>, %arg7: memref<1x1x32xf32, #tpu.memory_space<vmem>>, %arg8: memref<1x1x32xf32, #tpu.memory_space<vmem>>, %arg9: memref<1x32x64xf32, #tpu.memory_space<vmem>>, %arg10: memref<1x1x64xf32, #tpu.memory_space<vmem>>, %arg11: memref<1x64x32xf32, #tpu.memory_space<vmem>>, %arg12: memref<1x1x32xf32, #tpu.memory_space<vmem>>, %arg13: memref<1x1x32xf32, #tpu.memory_space<vmem>>, %arg14: memref<1x1x32xf32, #tpu.memory_space<vmem>>, %arg15: memref<2x8x32xf32, #tpu.memory_space<vmem>>, %arg16: memref<16x32xf32, #tpu.memory_space<vmem>>, %arg17: memref<16x32xf32, #tpu.memory_space<vmem>>) attributes {dimension_semantics = [#tpu.dimension_semantics<arbitrary>, #tpu.dimension_semantics<arbitrary>], iteration_bounds = array<i64: 2, 1>, scalar_prefetch = 0 : i64, scratch_operands = 2 : i64, tpu.core_type = #tpu.core_type<tc>, window_params = [{pipeline_mode = #tpu.pipeline_mode<synchronous>, transform_indices = @transform_0, window_bounds = array<i64: 2, 8, 32>}, {transform_indices = @transform_1, window_bounds = array<i64: 1, 32, 96>}, {transform_indices = @transform_2, window_bounds = array<i64: 1, 1, 96>}, {transform_indices = @transform_3, window_bounds = array<i64: 1, 32, 32>}, {transform_indices = @transform_4, window_bounds = array<i64: 1, 1, 32>}, {transform_indices = @transform_5, window_bounds = array<i64: 1, 1, 32>}, {transform_indices = @transform_6, window_bounds = array<i64: 1, 1, 32>}, {transform_indices = @transform_7, window_bounds = array<i64: 1, 32, 64>}, {transform_indices = @transform_8, window_bounds = array<i64: 1, 1, 64>}, {transform_indices = @transform_9, window_bounds = array<i64: 1, 64, 32>}, {transform_indices = @transform_10, window_bounds = array<i64: 1, 1, 32>}, {transform_indices = @transform_11, window_bounds = array<i64: 1, 1, 32>}, {transform_indices = @transform_12, window_bounds = array<i64: 1, 1, 32>}, {pipeline_mode = #tpu.pipeline_mode<synchronous>, transform_indices = @transform_13, window_bounds = array<i64: 2, 8, 32>}]} {
    %c0_i32 = arith.constant 0 : i32
    %0 = arith.cmpi eq, %arg0, %c0_i32 : i32
    %c0_i32_0 = arith.constant 0 : i32
    %1 = arith.cmpi eq, %arg1, %c0_i32_0 : i32
    %2 = arith.andi %0, %1 : i1
    %3 = arith.extui %2 : i1 to i32
    %c0_i32_1 = arith.constant 0 : i32
    %4 = arith.cmpi ne, %3, %c0_i32_1 : i32
    scf.if %4 {
      %c0_24 = arith.constant 0 : index
      %c0_25 = arith.constant 0 : index
      %c0_26 = arith.constant 0 : index
      %32 = vector.load %arg2[%c0_24, %c0_25, %c0_26] : memref<2x8x32xf32, #tpu.memory_space<vmem>>, vector<2x8x32xf32>
      %33 = vector.shape_cast %32 : vector<2x8x32xf32> to vector<16x32xf32>
      %c0_27 = arith.constant 0 : index
      %c0_28 = arith.constant 0 : index
      %34 = vector.load %arg16[%c0_27, %c0_28] : memref<16x32xf32, #tpu.memory_space<vmem>>, vector<16x32xf32>
      tpu.vector_store %arg16[%c0_27, %c0_28], %33 {strides = array<i32>} : memref<16x32xf32, #tpu.memory_space<vmem>>, vector<16x32xf32>,
    } else {
    }
    %c0_i32_2 = arith.constant 0 : i32
    %5 = arith.cmpi eq, %arg1, %c0_i32_2 : i32
    %6 = arith.extui %5 : i1 to i32
    %c0_i32_3 = arith.constant 0 : i32
    %7 = arith.cmpi ne, %6, %c0_i32_3 : i32
    scf.if %7 {
      %c0_24 = arith.constant 0 : index
      %c0_25 = arith.constant 0 : index
      %32 = vector.load %arg16[%c0_24, %c0_25] : memref<16x32xf32, #tpu.memory_space<vmem>>, vector<16x32xf32>
      %c0_26 = arith.constant 0 : index
      %c0_27 = arith.constant 0 : index
      %c0_28 = arith.constant 0 : index
      %33 = vector.load %arg3[%c0_26, %c0_27, %c0_28] : memref<1x32x96xf32, #tpu.memory_space<vmem>>, vector<1x32x96xf32>
      %34 = vector.shape_cast %33 : vector<1x32x96xf32> to vector<32x96xf32>
      %cst_29 = arith.constant dense<0.000000e+00> : vector<16x96xf32>
      %35 = tpu.matmul %32, %34, %cst_29 {dimension_numbers = #tpu.dot_dimension_numbers<[1], [0], [0], [1], [0, 0, 1, 1], [], []>} : vector<16x32xf32>, vector<32x96xf32>, vector<16x96xf32> -> vector<16x96xf32>
      %c0_30 = arith.constant 0 : index
      %c0_31 = arith.constant 0 : index
      %c0_32 = arith.constant 0 : index
      %36 = vector.load %arg4[%c0_30, %c0_31, %c0_32] : memref<1x1x96xf32, #tpu.memory_space<vmem>>, vector<1x1x96xf32>
      %37 = vector.shape_cast %36 : vector<1x1x96xf32> to vector<1x96xf32>
      %38 = vector.broadcast %37 : vector<1x96xf32> to vector<16x96xf32>
      %39 = arith.addf %35, %38 : vector<16x96xf32>
      %40 = vector.extract_strided_slice %39 {offsets = [0, 0], sizes = [16, 8], strides = [1, 1]} : vector<16x96xf32> to vector<16x8xf32>
      %41 = vector.shape_cast %40 : vector<16x8xf32> to vector<2x8x8xf32>
      %42 = vector.extract_strided_slice %39 {offsets = [0, 8], sizes = [16, 8], strides = [1, 1]} : vector<16x96xf32> to vector<16x8xf32>
      %43 = vector.shape_cast %42 : vector<16x8xf32> to vector<2x8x8xf32>
      %44 = vector.extract_strided_slice %39 {offsets = [0, 16], sizes = [16, 8], strides = [1, 1]} : vector<16x96xf32> to vector<16x8xf32>
      %45 = vector.shape_cast %44 : vector<16x8xf32> to vector<2x8x8xf32>
      %46 = vector.extract_strided_slice %39 {offsets = [0, 24], sizes = [16, 8], strides = [1, 1]} : vector<16x96xf32> to vector<16x8xf32>
      %47 = vector.shape_cast %46 : vector<16x8xf32> to vector<2x8x8xf32>
      %48 = vector.shape_cast %41 : vector<2x8x8xf32> to vector<1x2x8x8xf32>
      %49 = vector.shape_cast %43 : vector<2x8x8xf32> to vector<1x2x8x8xf32>
      %50 = vector.shape_cast %45 : vector<2x8x8xf32> to vector<1x2x8x8xf32>
      %51 = vector.shape_cast %47 : vector<2x8x8xf32> to vector<1x2x8x8xf32>
      %52 = tpu.concatenate %48, %49, %50, %51 in 0 : vector<1x2x8x8xf32>, vector<1x2x8x8xf32>, vector<1x2x8x8xf32>, vector<1x2x8x8xf32> -> vector<4x2x8x8xf32>
      %53 = vector.shape_cast %52 : vector<4x2x8x8xf32> to vector<8x8x8xf32>
      %54 = vector.extract_strided_slice %39 {offsets = [0, 32], sizes = [16, 8], strides = [1, 1]} : vector<16x96xf32> to vector<16x8xf32>
      %55 = vector.shape_cast %54 : vector<16x8xf32> to vector<2x8x8xf32>
      %56 = vector.extract_strided_slice %39 {offsets = [0, 40], sizes = [16, 8], strides = [1, 1]} : vector<16x96xf32> to vector<16x8xf32>
      %57 = vector.shape_cast %56 : vector<16x8xf32> to vector<2x8x8xf32>
      %58 = vector.extract_strided_slice %39 {offsets = [0, 48], sizes = [16, 8], strides = [1, 1]} : vector<16x96xf32> to vector<16x8xf32>
      %59 = vector.shape_cast %58 : vector<16x8xf32> to vector<2x8x8xf32>
      %60 = vector.extract_strided_slice %39 {offsets = [0, 56], sizes = [16, 8], strides = [1, 1]} : vector<16x96xf32> to vector<16x8xf32>
      %61 = vector.shape_cast %60 : vector<16x8xf32> to vector<2x8x8xf32>
      %62 = vector.shape_cast %55 : vector<2x8x8xf32> to vector<1x2x8x8xf32>
      %63 = vector.shape_cast %57 : vector<2x8x8xf32> to vector<1x2x8x8xf32>
      %64 = vector.shape_cast %59 : vector<2x8x8xf32> to vector<1x2x8x8xf32>
      %65 = vector.shape_cast %61 : vector<2x8x8xf32> to vector<1x2x8x8xf32>
      %66 = tpu.concatenate %62, %63, %64, %65 in 0 : vector<1x2x8x8xf32>, vector<1x2x8x8xf32>, vector<1x2x8x8xf32>, vector<1x2x8x8xf32> -> vector<4x2x8x8xf32>
      %67 = vector.shape_cast %66 : vector<4x2x8x8xf32> to vector<8x8x8xf32>
      %68 = vector.extract_strided_slice %39 {offsets = [0, 64], sizes = [16, 8], strides = [1, 1]} : vector<16x96xf32> to vector<16x8xf32>
      %69 = vector.shape_cast %68 : vector<16x8xf32> to vector<2x8x8xf32>
      %70 = vector.extract_strided_slice %39 {offsets = [0, 72], sizes = [16, 8], strides = [1, 1]} : vector<16x96xf32> to vector<16x8xf32>
      %71 = vector.shape_cast %70 : vector<16x8xf32> to vector<2x8x8xf32>
      %72 = vector.extract_strided_slice %39 {offsets = [0, 80], sizes = [16, 8], strides = [1, 1]} : vector<16x96xf32> to vector<16x8xf32>
      %73 = vector.shape_cast %72 : vector<16x8xf32> to vector<2x8x8xf32>
      %74 = vector.extract_strided_slice %39 {offsets = [0, 88], sizes = [16, 8], strides = [1, 1]} : vector<16x96xf32> to vector<16x8xf32>
      %75 = vector.shape_cast %74 : vector<16x8xf32> to vector<2x8x8xf32>
      %76 = vector.shape_cast %69 : vector<2x8x8xf32> to vector<1x2x8x8xf32>
      %77 = vector.shape_cast %71 : vector<2x8x8xf32> to vector<1x2x8x8xf32>
      %78 = vector.shape_cast %73 : vector<2x8x8xf32> to vector<1x2x8x8xf32>
      %79 = vector.shape_cast %75 : vector<2x8x8xf32> to vector<1x2x8x8xf32>
      %80 = tpu.concatenate %76, %77, %78, %79 in 0 : vector<1x2x8x8xf32>, vector<1x2x8x8xf32>, vector<1x2x8x8xf32>, vector<1x2x8x8xf32> -> vector<4x2x8x8xf32>
      %81 = vector.shape_cast %80 : vector<4x2x8x8xf32> to vector<8x8x8xf32>
      "tpu.trace_start"() <{level = 10 : i32, message = "gsd,gtd->gst"}> : () -> ()
      %cst_33 = arith.constant dense<0.000000e+00> : vector<8x8x8xf32>
      %82 = tpu.matmul %53, %67, %cst_33 {dimension_numbers = #tpu.dot_dimension_numbers<[2], [2], [1], [1], [0, 0, 0, 1, 1, 1], [0], [0]>} : vector<8x8x8xf32>, vector<8x8x8xf32>, vector<8x8x8xf32> -> vector<8x8x8xf32>
      "tpu.trace_stop"() : () -> ()
      %cst_34 = arith.constant dense<0xFF800000> : vector<8x8xf32>
      %83 = vector.multi_reduction <maximumf>, %82, %cst_34 [2] : vector<8x8x8xf32> to vector<8x8xf32>
      %84 = vector.shape_cast %83 : vector<8x8xf32> to vector<8x8x1xf32>
      %85 = vector.broadcast %84 : vector<8x8x1xf32> to vector<8x8x8xf32>
      %86 = arith.subf %82, %85 : vector<8x8x8xf32>
      %87 = math.exp %86 : vector<8x8x8xf32>
      %cst_35 = arith.constant dense<0.000000e+00> : vector<8x8xf32>
      %88 = vector.multi_reduction <add>, %87, %cst_35 [2] : vector<8x8x8xf32> to vector<8x8xf32>
      %89 = vector.shape_cast %88 : vector<8x8xf32> to vector<8x8x1xf32>
      %90 = tpu.reciprocal %89 {approx = true} : vector<8x8x1xf32> -> vector<8x8x1xf32>
      %91 = vector.broadcast %90 : vector<8x8x1xf32> to vector<8x8x8xf32>
      %92 = arith.mulf %87, %91 : vector<8x8x8xf32>
      "tpu.trace_start"() <{level = 10 : i32, message = "gst,gtd->gsd"}> : () -> ()
      %cst_36 = arith.constant dense<0.000000e+00> : vector<8x8x8xf32>
      %93 = tpu.matmul %92, %81, %cst_36 {dimension_numbers = #tpu.dot_dimension_numbers<[2], [1], [1], [2], [0, 0, 0, 1, 1, 2], [0], [0]>} : vector<8x8x8xf32>, vector<8x8x8xf32>, vector<8x8x8xf32> -> vector<8x8x8xf32>
      "tpu.trace_stop"() : () -> ()
      %94 = vector.shape_cast %93 : vector<8x8x8xf32> to vector<4x2x8x8xf32>
      %95 = vector.extract_strided_slice %94 {offsets = [0, 0, 0, 0], sizes = [1, 2, 8, 8], strides = [1, 1, 1, 1]} : vector<4x2x8x8xf32> to vector<1x2x8x8xf32>
      %96 = vector.shape_cast %95 : vector<1x2x8x8xf32> to vector<2x8x8xf32>
      %97 = vector.shape_cast %96 : vector<2x8x8xf32> to vector<16x8xf32>
      %98 = vector.extract_strided_slice %94 {offsets = [1, 0, 0, 0], sizes = [1, 2, 8, 8], strides = [1, 1, 1, 1]} : vector<4x2x8x8xf32> to vector<1x2x8x8xf32>
      %99 = vector.shape_cast %98 : vector<1x2x8x8xf32> to vector<2x8x8xf32>
      %100 = vector.shape_cast %99 : vector<2x8x8xf32> to vector<16x8xf32>
      %101 = vector.extract_strided_slice %94 {offsets = [2, 0, 0, 0], sizes = [1, 2, 8, 8], strides = [1, 1, 1, 1]} : vector<4x2x8x8xf32> to vector<1x2x8x8xf32>
      %102 = vector.shape_cast %101 : vector<1x2x8x8xf32> to vector<2x8x8xf32>
      %103 = vector.shape_cast %102 : vector<2x8x8xf32> to vector<16x8xf32>
      %104 = vector.extract_strided_slice %94 {offsets = [3, 0, 0, 0], sizes = [1, 2, 8, 8], strides = [1, 1, 1, 1]} : vector<4x2x8x8xf32> to vector<1x2x8x8xf32>
      %105 = vector.shape_cast %104 : vector<1x2x8x8xf32> to vector<2x8x8xf32>
      %106 = vector.shape_cast %105 : vector<2x8x8xf32> to vector<16x8xf32>
      %107 = tpu.concatenate %97, %100, %103, %106 in 1 : vector<16x8xf32>, vector<16x8xf32>, vector<16x8xf32>, vector<16x8xf32> -> vector<16x32xf32>
      %c0_37 = arith.constant 0 : index
      %c0_38 = arith.constant 0 : index
      %c0_39 = arith.constant 0 : index
      %108 = vector.load %arg5[%c0_37, %c0_38, %c0_39] : memref<1x32x32xf32, #tpu.memory_space<vmem>>, vector<1x32x32xf32>
      %109 = vector.shape_cast %108 : vector<1x32x32xf32> to vector<32x32xf32>
      %cst_40 = arith.constant dense<0.000000e+00> : vector<16x32xf32>
      %110 = tpu.matmul %107, %109, %cst_40 {dimension_numbers = #tpu.dot_dimension_numbers<[1], [0], [0], [1], [0, 0, 1, 1], [], []>} : vector<16x32xf32>, vector<32x32xf32>, vector<16x32xf32> -> vector<16x32xf32>
      %c0_41 = arith.constant 0 : index
      %c0_42 = arith.constant 0 : index
      %c0_43 = arith.constant 0 : index
      %111 = vector.load %arg6[%c0_41, %c0_42, %c0_43] : memref<1x1x32xf32, #tpu.memory_space<vmem>>, vector<1x1x32xf32>
      %112 = vector.shape_cast %111 : vector<1x1x32xf32> to vector<1x32xf32>
      %113 = vector.broadcast %112 : vector<1x32xf32> to vector<16x32xf32>
      %114 = arith.addf %110, %113 : vector<16x32xf32>
      %115 = arith.addf %32, %114 : vector<16x32xf32>
      %c0_44 = arith.constant 0 : index
      %c0_45 = arith.constant 0 : index
      %c0_46 = arith.constant 0 : index
      %116 = vector.load %arg7[%c0_44, %c0_45, %c0_46] : memref<1x1x32xf32, #tpu.memory_space<vmem>>, vector<1x1x32xf32>
      %117 = vector.shape_cast %116 : vector<1x1x32xf32> to vector<1x32xf32>
      %c0_47 = arith.constant 0 : index
      %c0_48 = arith.constant 0 : index
      %c0_49 = arith.constant 0 : index
      %118 = vector.load %arg8[%c0_47, %c0_48, %c0_49] : memref<1x1x32xf32, #tpu.memory_space<vmem>>, vector<1x1x32xf32>
      %119 = vector.shape_cast %118 : vector<1x1x32xf32> to vector<1x32xf32>
      %cst_50 = arith.constant dense<0.000000e+00> : vector<16xf32>
      %120 = vector.multi_reduction <add>, %115, %cst_50 [1] : vector<16x32xf32> to vector<16xf32>
      %121 = vector.shape_cast %120 : vector<16xf32> to vector<16x1xf32>
      %cst_51 = arith.constant 3.200000e+01 : f32
      %122 = vector.broadcast %cst_51 : f32 to vector<16x1xf32>
      %123 = arith.divf %121, %122 : vector<16x1xf32>
      %124 = arith.mulf %115, %115 : vector<16x32xf32>
      %cst_52 = arith.constant dense<0.000000e+00> : vector<16xf32>
      %125 = vector.multi_reduction <add>, %124, %cst_52 [1] : vector<16x32xf32> to vector<16xf32>
      %126 = vector.shape_cast %125 : vector<16xf32> to vector<16x1xf32>
      %cst_53 = arith.constant 3.200000e+01 : f32
      %127 = vector.broadcast %cst_53 : f32 to vector<16x1xf32>
      %128 = arith.divf %126, %127 : vector<16x1xf32>
      %129 = arith.mulf %123, %123 : vector<16x1xf32>
      %130 = arith.subf %128, %129 : vector<16x1xf32>
      %131 = vector.broadcast %123 : vector<16x1xf32> to vector<16x32xf32>
      %132 = arith.subf %115, %131 : vector<16x32xf32>
      %cst_54 = arith.constant 9.99999974E-6 : f32
      %133 = vector.broadcast %cst_54 : f32 to vector<16x1xf32>
      %134 = arith.addf %130, %133 : vector<16x1xf32>
      %135 = math.rsqrt %134 : vector<16x1xf32>
      %136 = vector.broadcast %135 : vector<16x1xf32> to vector<16x32xf32>
      %137 = arith.mulf %132, %136 : vector<16x32xf32>
      %138 = vector.broadcast %117 : vector<1x32xf32> to vector<16x32xf32>
      %139 = arith.mulf %137, %138 : vector<16x32xf32>
      %140 = vector.broadcast %119 : vector<1x32xf32> to vector<16x32xf32>
      %141 = arith.addf %139, %140 : vector<16x32xf32>
      %c0_55 = arith.constant 0 : index
      %c0_56 = arith.constant 0 : index
      %142 = vector.load %arg16[%c0_55, %c0_56] : memref<16x32xf32, #tpu.memory_space<vmem>>, vector<16x32xf32>
      tpu.vector_store %arg16[%c0_55, %c0_56], %141 {strides = array<i32>} : memref<16x32xf32, #tpu.memory_space<vmem>>, vector<16x32xf32>,
      %cst_57 = arith.constant 0.000000e+00 : f32
      %143 = vector.broadcast %cst_57 : f32 to vector<16x32xf32>
      %c0_58 = arith.constant 0 : index
      %c0_59 = arith.constant 0 : index
      %144 = vector.load %arg17[%c0_58, %c0_59] : memref<16x32xf32, #tpu.memory_space<vmem>>, vector<16x32xf32>
      tpu.vector_store %arg17[%c0_58, %c0_59], %143 {strides = array<i32>} : memref<16x32xf32, #tpu.memory_space<vmem>>, vector<16x32xf32>,
    } else {
    }
    %c0 = arith.constant 0 : index
    %c0_4 = arith.constant 0 : index
    %8 = vector.load %arg16[%c0, %c0_4] : memref<16x32xf32, #tpu.memory_space<vmem>>, vector<16x32xf32>
    %c0_5 = arith.constant 0 : index
    %c0_6 = arith.constant 0 : index
    %c0_7 = arith.constant 0 : index
    %9 = vector.load %arg9[%c0_5, %c0_6, %c0_7] : memref<1x32x64xf32, #tpu.memory_space<vmem>>, vector<1x32x64xf32>
    %10 = vector.shape_cast %9 : vector<1x32x64xf32> to vector<32x64xf32>
    %cst = arith.constant dense<0.000000e+00> : vector<16x64xf32>
    %11 = tpu.matmul %8, %10, %cst {dimension_numbers = #tpu.dot_dimension_numbers<[1], [0], [0], [1], [0, 0, 1, 1], [], []>} : vector<16x32xf32>, vector<32x64xf32>, vector<16x64xf32> -> vector<16x64xf32>
    %c0_8 = arith.constant 0 : index
    %c0_9 = arith.constant 0 : index
    %c0_10 = arith.constant 0 : index
    %12 = vector.load %arg10[%c0_8, %c0_9, %c0_10] : memref<1x1x64xf32, #tpu.memory_space<vmem>>, vector<1x1x64xf32>
    %13 = vector.shape_cast %12 : vector<1x1x64xf32> to vector<1x64xf32>
    %14 = vector.broadcast %13 : vector<1x64xf32> to vector<16x64xf32>
    %15 = arith.addf %11, %14 : vector<16x64xf32>
    %cst_11 = arith.constant 0.000000e+00 : f32
    %16 = vector.broadcast %cst_11 : f32 to vector<16x64xf32>
    %17 = arith.maximumf %15, %16 : vector<16x64xf32>
    %c0_12 = arith.constant 0 : index
    %c0_13 = arith.constant 0 : index
    %18 = vector.load %arg17[%c0_12, %c0_13] : memref<16x32xf32, #tpu.memory_space<vmem>>, vector<16x32xf32>
    %c0_14 = arith.constant 0 : index
    %c0_15 = arith.constant 0 : index
    %c0_16 = arith.constant 0 : index
    %19 = vector.load %arg11[%c0_14, %c0_15, %c0_16] : memref<1x64x32xf32, #tpu.memory_space<vmem>>, vector<1x64x32xf32>
    %20 = vector.shape_cast %19 : vector<1x64x32xf32> to vector<64x32xf32>
    %cst_17 = arith.constant dense<0.000000e+00> : vector<16x32xf32>
    %21 = tpu.matmul %17, %20, %cst_17 {dimension_numbers = #tpu.dot_dimension_numbers<[1], [0], [0], [1], [0, 0, 1, 1], [], []>} : vector<16x64xf32>, vector<64x32xf32>, vector<16x32xf32> -> vector<16x32xf32>
    %22 = arith.addf %18, %21 : vector<16x32xf32>
    %c0_18 = arith.constant 0 : index
    %c0_19 = arith.constant 0 : index
    %23 = vector.load %arg17[%c0_18, %c0_19] : memref<16x32xf32, #tpu.memory_space<vmem>>, vector<16x32xf32>
    tpu.vector_store %arg17[%c0_18, %c0_19], %22 {strides = array<i32>} : memref<16x32xf32, #tpu.memory_space<vmem>>, vector<16x32xf32>,
    %c0_i32_20 = arith.constant 0 : i32
    %24 = arith.cmpi eq, %arg1, %c0_i32_20 : i32
    %25 = arith.extui %24 : i1 to i32
    %c0_i32_21 = arith.constant 0 : i32
    %26 = arith.cmpi ne, %25, %c0_i32_21 : i32
    scf.if %26 {
      %c0_24 = arith.constant 0 : index
      %c0_25 = arith.constant 0 : index
      %32 = vector.load %arg16[%c0_24, %c0_25] : memref<16x32xf32, #tpu.memory_space<vmem>>, vector<16x32xf32>
      %c0_26 = arith.constant 0 : index
      %c0_27 = arith.constant 0 : index
      %33 = vector.load %arg17[%c0_26, %c0_27] : memref<16x32xf32, #tpu.memory_space<vmem>>, vector<16x32xf32>
      %34 = arith.addf %32, %33 : vector<16x32xf32>
      %c0_28 = arith.constant 0 : index
      %c0_29 = arith.constant 0 : index
      %c0_30 = arith.constant 0 : index
      %35 = vector.load %arg12[%c0_28, %c0_29, %c0_30] : memref<1x1x32xf32, #tpu.memory_space<vmem>>, vector<1x1x32xf32>
      %36 = vector.shape_cast %35 : vector<1x1x32xf32> to vector<1x32xf32>
      %37 = vector.broadcast %36 : vector<1x32xf32> to vector<16x32xf32>
      %38 = arith.addf %34, %37 : vector<16x32xf32>
      %c0_31 = arith.constant 0 : index
      %c0_32 = arith.constant 0 : index
      %c0_33 = arith.constant 0 : index
      %39 = vector.load %arg13[%c0_31, %c0_32, %c0_33] : memref<1x1x32xf32, #tpu.memory_space<vmem>>, vector<1x1x32xf32>
      %40 = vector.shape_cast %39 : vector<1x1x32xf32> to vector<1x32xf32>
      %c0_34 = arith.constant 0 : index
      %c0_35 = arith.constant 0 : index
      %c0_36 = arith.constant 0 : index
      %41 = vector.load %arg14[%c0_34, %c0_35, %c0_36] : memref<1x1x32xf32, #tpu.memory_space<vmem>>, vector<1x1x32xf32>
      %42 = vector.shape_cast %41 : vector<1x1x32xf32> to vector<1x32xf32>
      %cst_37 = arith.constant dense<0.000000e+00> : vector<16xf32>
      %43 = vector.multi_reduction <add>, %38, %cst_37 [1] : vector<16x32xf32> to vector<16xf32>
      %44 = vector.shape_cast %43 : vector<16xf32> to vector<16x1xf32>
      %cst_38 = arith.constant 3.200000e+01 : f32
      %45 = vector.broadcast %cst_38 : f32 to vector<16x1xf32>
      %46 = arith.divf %44, %45 : vector<16x1xf32>
      %47 = arith.mulf %38, %38 : vector<16x32xf32>
      %cst_39 = arith.constant dense<0.000000e+00> : vector<16xf32>
      %48 = vector.multi_reduction <add>, %47, %cst_39 [1] : vector<16x32xf32> to vector<16xf32>
      %49 = vector.shape_cast %48 : vector<16xf32> to vector<16x1xf32>
      %cst_40 = arith.constant 3.200000e+01 : f32
      %50 = vector.broadcast %cst_40 : f32 to vector<16x1xf32>
      %51 = arith.divf %49, %50 : vector<16x1xf32>
      %52 = arith.mulf %46, %46 : vector<16x1xf32>
      %53 = arith.subf %51, %52 : vector<16x1xf32>
      %54 = vector.broadcast %46 : vector<16x1xf32> to vector<16x32xf32>
      %55 = arith.subf %38, %54 : vector<16x32xf32>
      %cst_41 = arith.constant 9.99999974E-6 : f32
      %56 = vector.broadcast %cst_41 : f32 to vector<16x1xf32>
      %57 = arith.addf %53, %56 : vector<16x1xf32>
      %58 = math.rsqrt %57 : vector<16x1xf32>
      %59 = vector.broadcast %58 : vector<16x1xf32> to vector<16x32xf32>
      %60 = arith.mulf %55, %59 : vector<16x32xf32>
      %61 = vector.broadcast %40 : vector<1x32xf32> to vector<16x32xf32>
      %62 = arith.mulf %60, %61 : vector<16x32xf32>
      %63 = vector.broadcast %42 : vector<1x32xf32> to vector<16x32xf32>
      %64 = arith.addf %62, %63 : vector<16x32xf32>
      %c0_42 = arith.constant 0 : index
      %c0_43 = arith.constant 0 : index
      %65 = vector.load %arg16[%c0_42, %c0_43] : memref<16x32xf32, #tpu.memory_space<vmem>>, vector<16x32xf32>
      tpu.vector_store %arg16[%c0_42, %c0_43], %64 {strides = array<i32>} : memref<16x32xf32, #tpu.memory_space<vmem>>, vector<16x32xf32>,
    } else {
    }
    %c0_i32_22 = arith.constant 0 : i32
    %27 = arith.cmpi eq, %arg1, %c0_i32_22 : i32
    %c1_i32 = arith.constant 1 : i32
    %28 = arith.cmpi eq, %arg0, %c1_i32 : i32
    %29 = arith.andi %27, %28 : i1
    %30 = arith.extui %29 : i1 to i32
    %c0_i32_23 = arith.constant 0 : i32
    %31 = arith.cmpi ne, %30, %c0_i32_23 : i32
    scf.if %31 {
      %c0_24 = arith.constant 0 : index
      %c0_25 = arith.constant 0 : index
      %32 = vector.load %arg16[%c0_24, %c0_25] : memref<16x32xf32, #tpu.memory_space<vmem>>, vector<16x32xf32>
      %33 = vector.shape_cast %32 : vector<16x32xf32> to vector<2x8x32xf32>
      %c0_26 = arith.constant 0 : index
      %c0_27 = arith.constant 0 : index
      %c0_28 = arith.constant 0 : index
      %34 = vector.load %arg15[%c0_26, %c0_27, %c0_28] : memref<2x8x32xf32, #tpu.memory_space<vmem>>, vector<2x8x32xf32>
      tpu.vector_store %arg15[%c0_26, %c0_27, %c0_28], %33 {strides = array<i32>} : memref<2x8x32xf32, #tpu.memory_space<vmem>>, vector<2x8x32xf32>,
    } else {
    }
    return
  }
  func.func @transform_0(%arg0: i32, %arg1: i32) -> (i32, i32, i32) {
    %c0_i32 = arith.constant 0 : i32
    %c0_i32_0 = arith.constant 0 : i32
    %c0_i32_1 = arith.constant 0 : i32
    %c0_i32_2 = arith.constant 0 : i32
    return %c0_i32, %c0_i32_0, %c0_i32_1 : i32, i32, i32
  }
  func.func @transform_1(%arg0: i32, %arg1: i32) -> (i32, i32, i32) {
    %c0_i32 = arith.constant 0 : i32
    %c0_i32_0 = arith.constant 0 : i32
    %c0_i32_1 = arith.constant 0 : i32
    return %arg0, %c0_i32, %c0_i32_0 : i32, i32, i32
  }
  func.func @transform_2(%arg0: i32, %arg1: i32) -> (i32, i32, i32) {
    %c0_i32 = arith.constant 0 : i32
    %c0_i32_0 = arith.constant 0 : i32
    %c0_i32_1 = arith.constant 0 : i32
    return %arg0, %c0_i32, %c0_i32_0 : i32, i32, i32
  }
  func.func @transform_3(%arg0: i32, %arg1: i32) -> (i32, i32, i32) {
    %c0_i32 = arith.constant 0 : i32
    %c0_i32_0 = arith.constant 0 : i32
    %c0_i32_1 = arith.constant 0 : i32
    return %arg0, %c0_i32, %c0_i32_0 : i32, i32, i32
  }
  func.func @transform_4(%arg0: i32, %arg1: i32) -> (i32, i32, i32) {
    %c0_i32 = arith.constant 0 : i32
    %c0_i32_0 = arith.constant 0 : i32
    %c0_i32_1 = arith.constant 0 : i32
    return %arg0, %c0_i32, %c0_i32_0 : i32, i32, i32
  }
  func.func @transform_5(%arg0: i32, %arg1: i32) -> (i32, i32, i32) {
    %c0_i32 = arith.constant 0 : i32
    %c0_i32_0 = arith.constant 0 : i32
    %c0_i32_1 = arith.constant 0 : i32
    return %arg0, %c0_i32, %c0_i32_0 : i32, i32, i32
  }
  func.func @transform_6(%arg0: i32, %arg1: i32) -> (i32, i32, i32) {
    %c0_i32 = arith.constant 0 : i32
    %c0_i32_0 = arith.constant 0 : i32
    %c0_i32_1 = arith.constant 0 : i32
    return %arg0, %c0_i32, %c0_i32_0 : i32, i32, i32
  }
  func.func @transform_7(%arg0: i32, %arg1: i32) -> (i32, i32, i32) {
    %c0_i32 = arith.constant 0 : i32
    %c0_i32_0 = arith.constant 0 : i32
    return %arg0, %c0_i32, %arg1 : i32, i32, i32
  }
  func.func @transform_8(%arg0: i32, %arg1: i32) -> (i32, i32, i32) {
    %c0_i32 = arith.constant 0 : i32
    %c0_i32_0 = arith.constant 0 : i32
    return %arg0, %c0_i32, %arg1 : i32, i32, i32
  }
  func.func @transform_9(%arg0: i32, %arg1: i32) -> (i32, i32, i32) {
    %c0_i32 = arith.constant 0 : i32
    %c0_i32_0 = arith.constant 0 : i32
    return %arg0, %arg1, %c0_i32 : i32, i32, i32
  }
  func.func @transform_10(%arg0: i32, %arg1: i32) -> (i32, i32, i32) {
    %c0_i32 = arith.constant 0 : i32
    %c0_i32_0 = arith.constant 0 : i32
    %c0_i32_1 = arith.constant 0 : i32
    return %arg0, %c0_i32, %c0_i32_0 : i32, i32, i32
  }
  func.func @transform_11(%arg0: i32, %arg1: i32) -> (i32, i32, i32) {
    %c0_i32 = arith.constant 0 : i32
    %c0_i32_0 = arith.constant 0 : i32
    %c0_i32_1 = arith.constant 0 : i32
    return %arg0, %c0_i32, %c0_i32_0 : i32, i32, i32
  }
  func.func @transform_12(%arg0: i32, %arg1: i32) -> (i32, i32, i32) {
    %c0_i32 = arith.constant 0 : i32
    %c0_i32_0 = arith.constant 0 : i32
    %c0_i32_1 = arith.constant 0 : i32
    return %arg0, %c0_i32, %c0_i32_0 : i32, i32, i32
  }
  func.func @transform_13(%arg0: i32, %arg1: i32) -> (i32, i32, i32) {
    %c0_i32 = arith.constant 0 : i32
    %c0_i32_0 = arith.constant 0 : i32
    %c0_i32_1 = arith.constant 0 : i32
    %c0_i32_2 = arith.constant 0 : i32
    return %c0_i32, %c0_i32_0, %c0_i32_1 : i32, i32, i32
  }
}

</mosaic_0001>

<llo_original>
// kernel: tpu_custom_call.1
$region0: #{tpu_custom_call.1}
  #allocation0 [shape = 'u32[]', space=smem, size = 0x4, offset = 0x4, fixed_abs, tag = 'smem constant byte address 0x4 - core index']
  #allocation1 [shape = 'u32[144,128]{1,0:T(1,128)}', space=vmem, size = 0x12000, scoped, tag = 'internal scratch']
  #allocation2 [shape = 'f32[16,32]{1,0:T(8,128)}', space=vmem, size = 0x2000, scoped, tag = 'scratch operand']
  #allocation3 [shape = 'f32[16,32]{1,0:T(8,128)}', space=vmem, size = 0x2000, scoped, tag = 'scratch operand']
  %s0 = inlined_call_operand.hbm [shape: f32[2,8,32], index: 0, kind: input, shape index: {}]
  %s1 = inlined_call_operand.vmem [shape: f32[2,32,96], index: 1, kind: input, shape index: {}]
  %s2 = inlined_call_operand.vmem [shape: f32[2,1,96], index: 2, kind: input, shape index: {}]
  %s3 = inlined_call_operand.vmem [shape: f32[2,32,32], index: 3, kind: input, shape index: {}]
  %s4 = inlined_call_operand.vmem [shape: f32[2,1,32], index: 4, kind: input, shape index: {}]
  %s5 = inlined_call_operand.vmem [shape: f32[2,1,32], index: 5, kind: input, shape index: {}]
  %s6 = inlined_call_operand.vmem [shape: f32[2,1,32], index: 6, kind: input, shape index: {}]
  %s7 = inlined_call_operand.vmem [shape: f32[2,32,64], index: 7, kind: input, shape index: {}]
  %s8 = inlined_call_operand.vmem [shape: f32[2,1,64], index: 8, kind: input, shape index: {}]
  %s9 = inlined_call_operand.vmem [shape: f32[2,64,32], index: 9, kind: input, shape index: {}]
  %s10 = inlined_call_operand.vmem [shape: f32[2,1,32], index: 10, kind: input, shape index: {}]
  %s11 = inlined_call_operand.vmem [shape: f32[2,1,32], index: 11, kind: input, shape index: {}]
  %s12 = inlined_call_operand.vmem [shape: f32[2,1,32], index: 12, kind: input, shape index: {}]
  %s13 = inlined_call_operand.hbm [shape: f32[2,8,32], index: 13, kind: output, shape index: {}]
  %s14 = sld [smem:[#allocation0]]
  $region105: #{tpu_custom_call.1} parent=0
    _
  %s16 = ssub.s32 1, %s14
  %s17 = scalar_select 0, %s16, %s14
  $region1: #{tpu_custom_call.1} parent=0
    #allocation4 [shape = 'u8[8192]{0}', space=vmem, size = 0x2000, scoped, tag = 'input window, operand 0, single buffered']
    #allocation5 [shape = 's32[2]{0}', space=sflag, size = 0x8, scoped, tag = 'scoped memory for tpu_custom_call.1']
    #allocation6 [shape = 's32[2]{0}', space=sflag, size = 0x8, scoped, tag = 'scoped memory for tpu_custom_call.1']
    #allocation7 [shape = 'u8[8192]{0}', space=vmem, size = 0x2000, scoped, tag = 'output window, operand 0, single buffered']
    %18 = vsyncpa [#allocation5], 0
    %19 = vsyncpa [#allocation6], 0
    loop: start=0, step=1, limit=4
    $region2: #{tpu_custom_call.1} parent=1 // loop_pre_header
      _
    $region3: #{tpu_custom_call.1} parent=1 // loop_header
      %s21 = sphi 0, %s25
      %p22 = scmp.ge.s32.totalorder %s21, 4
      %s28 = sphi 0, %s40
      %s29 = sphi 0, %s36
      %s30 = sphi 0, %s28
      %s31 = sphi 0, %s29
      %s32 = sphi 0, %s30
      %s33 = sphi 0, %s31
      %s41 = sphi 0, %s41
      %s43 = sphi 0, %s41
      %s44 = sphi 0, %s43
      %s58 = sphi 0, %s44
      %s64 = sphi 0, %s66
      %s67 = sphi 0, %s64
      %s68 = sphi 0, %s67
      %s84 = sphi 0, %s68
      %s90 = sphi 0, %s92
      %s93 = sphi 0, %s90
      %s94 = sphi 0, %s93
      %s110 = sphi 0, %s94
      %s116 = sphi 0, %s118
      %s119 = sphi 0, %s116
      %s120 = sphi 0, %s119
      %s136 = sphi 0, %s120
      %s142 = sphi 0, %s144
      %s145 = sphi 0, %s142
      %s146 = sphi 0, %s145
      %s162 = sphi 0, %s146
      %s168 = sphi 0, %s170
      %s171 = sphi 0, %s168
      %s172 = sphi 0, %s171
      %s188 = sphi 0, %s172
      %s194 = sphi 0, %s196
      %s197 = sphi 0, %s194
      %s198 = sphi 0, %s197
      %s214 = sphi 0, %s198
      %s222 = sphi 0, %s224
      %s225 = sphi 0, %s222
      %s226 = sphi 0, %s225
      %s242 = sphi 0, %s226
      %s250 = sphi 0, %s252
      %s253 = sphi 0, %s250
      %s254 = sphi 0, %s253
      %s270 = sphi 0, %s254
      %s278 = sphi 0, %s280
      %s281 = sphi 0, %s278
      %s282 = sphi 0, %s281
      %s298 = sphi 0, %s282
      %s304 = sphi 0, %s306
      %s307 = sphi 0, %s304
      %s308 = sphi 0, %s307
      %s324 = sphi 0, %s308
      %s330 = sphi 0, %s332
      %s333 = sphi 0, %s330
      %s334 = sphi 0, %s333
      %s350 = sphi 0, %s334
      %s356 = sphi 0, %s358
      %s359 = sphi 0, %s356
      %s360 = sphi 0, %s359
      %s376 = sphi 0, %s360
      %s380 = sphi 0, %s380
      %s382 = sphi 0, %s380
      %s383 = sphi 0, %s382
      %s397 = sphi 0, %s383
    $region4: #{tpu_custom_call.1} parent=1 // loop_header_branch
      %24 = sbr.rel (%p22) target = $region8
    $region5: #{tpu_custom_call.1} parent=1 // loop_body
      %s26 = ssub.s32 %s21, 1
      %s27 = ssub.s32 %s21, 2
      %s34 = sadd.s32 1, %s29
      %p35 = scmp.ge.s32.totalorder %s34, 1
      %s36 = scalar_select %p35, 0, %s34
      %s37 = sadd.s32 1, %s28
      %s38 = scalar_select %p35, %s37, %s28
      %p39 = scmp.ge.s32.totalorder %s38, 2
      %s40 = scalar_select %p39, 0, %s38
      %s42 = sadd.s32 %s41, 1
      %p45 = scmp.eq.s32.totalorder %s21, 1
      %p46 = scmp.ne.s32.totalorder %s41, %s43
      %p47 = scmp.eq.s32.totalorder %s21, 0
      %p48 = por %p46, %p47
      %p49 = scmp.ne.s32.totalorder %s41, %s43
      %p50 = scmp.eq.s32.totalorder %s26, 1
      %p51 = por %p49, %p50
      %p52 = scmp.ne.s32.totalorder %s43, %s44
      %p53 = scmp.eq.s32.totalorder %s26, 0
      %p54 = por %p52, %p53
      %p55 = scmp.ne.s32.totalorder %s43, %s44
      %p56 = scmp.eq.s32.totalorder %s27, 1
      %p57 = por %p55, %p56
      %p59 = scmp.ne.s32.totalorder %s44, %s58
      %p60 = scmp.eq.s32.totalorder %s27, 0
      %p61 = por %p59, %p60
      %s62 = ssub.s32 %s28, %s40
      %p63 = scmp.eq.s32.totalorder %s62, 0
      %s65 = sadd.s32 %s64, 1
      %s66 = scalar_select %p63, %s64, %s65
      %p69 = pneg %p63
      %p70 = scmp.eq.s32.totalorder %s21, 1
      %p71 = por %p69, %p70
      %p72 = scmp.ne.s32.totalorder %s64, %s67
      %p73 = scmp.eq.s32.totalorder %s21, 0
      %p74 = por %p72, %p73
      %p75 = scmp.ne.s32.totalorder %s64, %s67
      %p76 = scmp.eq.s32.totalorder %s26, 1
      %p77 = por %p75, %p76
      %p78 = scmp.ne.s32.totalorder %s67, %s68
      %p79 = scmp.eq.s32.totalorder %s26, 0
      %p80 = por %p78, %p79
      %p81 = scmp.ne.s32.totalorder %s67, %s68
      %p82 = scmp.eq.s32.totalorder %s27, 1
      %p83 = por %p81, %p82
      %p85 = scmp.ne.s32.totalorder %s68, %s84
      %p86 = scmp.eq.s32.totalorder %s27, 0
      %p87 = por %p85, %p86
      %s88 = ssub.s32 %s28, %s40
      %p89 = scmp.eq.s32.totalorder %s88, 0
      %s91 = sadd.s32 %s90, 1
      %s92 = scalar_select %p89, %s90, %s91
      %p95 = pneg %p89
      %p96 = scmp.eq.s32.totalorder %s21, 1
      %p97 = por %p95, %p96
      %p98 = scmp.ne.s32.totalorder %s90, %s93
      %p99 = scmp.eq.s32.totalorder %s21, 0
      %p100 = por %p98, %p99
      %p101 = scmp.ne.s32.totalorder %s90, %s93
      %p102 = scmp.eq.s32.totalorder %s26, 1
      %p103 = por %p101, %p102
      %p104 = scmp.ne.s32.totalorder %s93, %s94
      %p105 = scmp.eq.s32.totalorder %s26, 0
      %p106 = por %p104, %p105
      %p107 = scmp.ne.s32.totalorder %s93, %s94
      %p108 = scmp.eq.s32.totalorder %s27, 1
      %p109 = por %p107, %p108
      %p111 = scmp.ne.s32.totalorder %s94, %s110
      %p112 = scmp.eq.s32.totalorder %s27, 0
      %p113 = por %p111, %p112
      %s114 = ssub.s32 %s28, %s40
      %p115 = scmp.eq.s32.totalorder %s114, 0
      %s117 = sadd.s32 %s116, 1
      %s118 = scalar_select %p115, %s116, %s117
      %p121 = pneg %p115
      %p122 = scmp.eq.s32.totalorder %s21, 1
      %p123 = por %p121, %p122
      %p124 = scmp.ne.s32.totalorder %s116, %s119
      %p125 = scmp.eq.s32.totalorder %s21, 0
      %p126 = por %p124, %p125
      %p127 = scmp.ne.s32.totalorder %s116, %s119
      %p128 = scmp.eq.s32.totalorder %s26, 1
      %p129 = por %p127, %p128
      %p130 = scmp.ne.s32.totalorder %s119, %s120
      %p131 = scmp.eq.s32.totalorder %s26, 0
      %p132 = por %p130, %p131
      %p133 = scmp.ne.s32.totalorder %s119, %s120
      %p134 = scmp.eq.s32.totalorder %s27, 1
      %p135 = por %p133, %p134
      %p137 = scmp.ne.s32.totalorder %s120, %s136
      %p138 = scmp.eq.s32.totalorder %s27, 0
      %p139 = por %p137, %p138
      %s140 = ssub.s32 %s28, %s40
      %p141 = scmp.eq.s32.totalorder %s140, 0
      %s143 = sadd.s32 %s142, 1
      %s144 = scalar_select %p141, %s142, %s143
      %p147 = pneg %p141
      %p148 = scmp.eq.s32.totalorder %s21, 1
      %p149 = por %p147, %p148
      %p150 = scmp.ne.s32.totalorder %s142, %s145
      %p151 = scmp.eq.s32.totalorder %s21, 0
      %p152 = por %p150, %p151
      %p153 = scmp.ne.s32.totalorder %s142, %s145
      %p154 = scmp.eq.s32.totalorder %s26, 1
      %p155 = por %p153, %p154
      %p156 = scmp.ne.s32.totalorder %s145, %s146
      %p157 = scmp.eq.s32.totalorder %s26, 0
      %p158 = por %p156, %p157
      %p159 = scmp.ne.s32.totalorder %s145, %s146
      %p160 = scmp.eq.s32.totalorder %s27, 1
      %p161 = por %p159, %p160
      %p163 = scmp.ne.s32.totalorder %s146, %s162
      %p164 = scmp.eq.s32.totalorder %s27, 0
      %p165 = por %p163, %p164
      %s166 = ssub.s32 %s28, %s40
      %p167 = scmp.eq.s32.totalorder %s166, 0
      %s169 = sadd.s32 %s168, 1
      %s170 = scalar_select %p167, %s168, %s169
      %p173 = pneg %p167
      %p174 = scmp.eq.s32.totalorder %s21, 1
      %p175 = por %p173, %p174
      %p176 = scmp.ne.s32.totalorder %s168, %s171
      %p177 = scmp.eq.s32.totalorder %s21, 0
      %p178 = por %p176, %p177
      %p179 = scmp.ne.s32.totalorder %s168, %s171
      %p180 = scmp.eq.s32.totalorder %s26, 1
      %p181 = por %p179, %p180
      %p182 = scmp.ne.s32.totalorder %s171, %s172
      %p183 = scmp.eq.s32.totalorder %s26, 0
      %p184 = por %p182, %p183
      %p185 = scmp.ne.s32.totalorder %s171, %s172
      %p186 = scmp.eq.s32.totalorder %s27, 1
      %p187 = por %p185, %p186
      %p189 = scmp.ne.s32.totalorder %s172, %s188
      %p190 = scmp.eq.s32.totalorder %s27, 0
      %p191 = por %p189, %p190
      %s192 = ssub.s32 %s28, %s40
      %p193 = scmp.eq.s32.totalorder %s192, 0
      %s195 = sadd.s32 %s194, 1
      %s196 = scalar_select %p193, %s194, %s195
      %p199 = pneg %p193
      %p200 = scmp.eq.s32.totalorder %s21, 1
      %p201 = por %p199, %p200
      %p202 = scmp.ne.s32.totalorder %s194, %s197
      %p203 = scmp.eq.s32.totalorder %s21, 0
      %p204 = por %p202, %p203
      %p205 = scmp.ne.s32.totalorder %s194, %s197
      %p206 = scmp.eq.s32.totalorder %s26, 1
      %p207 = por %p205, %p206
      %p208 = scmp.ne.s32.totalorder %s197, %s198
      %p209 = scmp.eq.s32.totalorder %s26, 0
      %p210 = por %p208, %p209
      %p211 = scmp.ne.s32.totalorder %s197, %s198
      %p212 = scmp.eq.s32.totalorder %s27, 1
      %p213 = por %p211, %p212
      %p215 = scmp.ne.s32.totalorder %s198, %s214
      %p216 = scmp.eq.s32.totalorder %s27, 0
      %p217 = por %p215, %p216
      %s218 = ssub.s32 %s28, %s40
      %s219 = ssub.s32 %s29, %s36
      %s220 = sor.u32 %s218, %s219
      %p221 = scmp.eq.s32.totalorder %s220, 0
      %s223 = sadd.s32 %s222, 1
      %s224 = scalar_select %p221, %s222, %s223
      %p227 = pneg %p221
      %p228 = scmp.eq.s32.totalorder %s21, 1
      %p229 = por %p227, %p228
      %p230 = scmp.ne.s32.totalorder %s222, %s225
      %p231 = scmp.eq.s32.totalorder %s21, 0
      %p232 = por %p230, %p231
      %p233 = scmp.ne.s32.totalorder %s222, %s225
      %p234 = scmp.eq.s32.totalorder %s26, 1
      %p235 = por %p233, %p234
      %p236 = scmp.ne.s32.totalorder %s225, %s226
      %p237 = scmp.eq.s32.totalorder %s26, 0
      %p238 = por %p236, %p237
      %p239 = scmp.ne.s32.totalorder %s225, %s226
      %p240 = scmp.eq.s32.totalorder %s27, 1
      %p241 = por %p239, %p240
      %p243 = scmp.ne.s32.totalorder %s226, %s242
      %p244 = scmp.eq.s32.totalorder %s27, 0
      %p245 = por %p243, %p244
      %s246 = ssub.s32 %s28, %s40
      %s247 = ssub.s32 %s29, %s36
      %s248 = sor.u32 %s246, %s247
      %p249 = scmp.eq.s32.totalorder %s248, 0
      %s251 = sadd.s32 %s250, 1
      %s252 = scalar_select %p249, %s250, %s251
      %p255 = pneg %p249
      %p256 = scmp.eq.s32.totalorder %s21, 1
      %p257 = por %p255, %p256
      %p258 = scmp.ne.s32.totalorder %s250, %s253
      %p259 = scmp.eq.s32.totalorder %s21, 0
      %p260 = por %p258, %p259
      %p261 = scmp.ne.s32.totalorder %s250, %s253
      %p262 = scmp.eq.s32.totalorder %s26, 1
      %p263 = por %p261, %p262
      %p264 = scmp.ne.s32.totalorder %s253, %s254
      %p265 = scmp.eq.s32.totalorder %s26, 0
      %p266 = por %p264, %p265
      %p267 = scmp.ne.s32.totalorder %s253, %s254
      %p268 = scmp.eq.s32.totalorder %s27, 1
      %p269 = por %p267, %p268
      %p271 = scmp.ne.s32.totalorder %s254, %s270
      %p272 = scmp.eq.s32.totalorder %s27, 0
      %p273 = por %p271, %p272
      %s274 = ssub.s32 %s28, %s40
      %s275 = ssub.s32 %s29, %s36
      %s276 = sor.u32 %s274, %s275
      %p277 = scmp.eq.s32.totalorder %s276, 0
      %s279 = sadd.s32 %s278, 1
      %s280 = scalar_select %p277, %s278, %s279
      %p283 = pneg %p277
      %p284 = scmp.eq.s32.totalorder %s21, 1
      %p285 = por %p283, %p284
      %p286 = scmp.ne.s32.totalorder %s278, %s281
      %p287 = scmp.eq.s32.totalorder %s21, 0
      %p288 = por %p286, %p287
      %p289 = scmp.ne.s32.totalorder %s278, %s281
      %p290 = scmp.eq.s32.totalorder %s26, 1
      %p291 = por %p289, %p290
      %p292 = scmp.ne.s32.totalorder %s281, %s282
      %p293 = scmp.eq.s32.totalorder %s26, 0
      %p294 = por %p292, %p293
      %p295 = scmp.ne.s32.totalorder %s281, %s282
      %p296 = scmp.eq.s32.totalorder %s27, 1
      %p297 = por %p295, %p296
      %p299 = scmp.ne.s32.totalorder %s282, %s298
      %p300 = scmp.eq.s32.totalorder %s27, 0
      %p301 = por %p299, %p300
      %s302 = ssub.s32 %s28, %s40
      %p303 = scmp.eq.s32.totalorder %s302, 0
      %s305 = sadd.s32 %s304, 1
      %s306 = scalar_select %p303, %s304, %s305
      %p309 = pneg %p303
      %p310 = scmp.eq.s32.totalorder %s21, 1
      %p311 = por %p309, %p310
      %p312 = scmp.ne.s32.totalorder %s304, %s307
      %p313 = scmp.eq.s32.totalorder %s21, 0
      %p314 = por %p312, %p313
      %p315 = scmp.ne.s32.totalorder %s304, %s307
      %p316 = scmp.eq.s32.totalorder %s26, 1
      %p317 = por %p315, %p316
      %p318 = scmp.ne.s32.totalorder %s307, %s308
      %p319 = scmp.eq.s32.totalorder %s26, 0
      %p320 = por %p318, %p319
      %p321 = scmp.ne.s32.totalorder %s307, %s308
      %p322 = scmp.eq.s32.totalorder %s27, 1
      %p323 = por %p321, %p322
      %p325 = scmp.ne.s32.totalorder %s308, %s324
      %p326 = scmp.eq.s32.totalorder %s27, 0
      %p327 = por %p325, %p326
      %s328 = ssub.s32 %s28, %s40
      %p329 = scmp.eq.s32.totalorder %s328, 0
      %s331 = sadd.s32 %s330, 1
      %s332 = scalar_select %p329, %s330, %s331
      %p335 = pneg %p329
      %p336 = scmp.eq.s32.totalorder %s21, 1
      %p337 = por %p335, %p336
      %p338 = scmp.ne.s32.totalorder %s330, %s333
      %p339 = scmp.eq.s32.totalorder %s21, 0
      %p340 = por %p338, %p339
      %p341 = scmp.ne.s32.totalorder %s330, %s333
      %p342 = scmp.eq.s32.totalorder %s26, 1
      %p343 = por %p341, %p342
      %p344 = scmp.ne.s32.totalorder %s333, %s334
      %p345 = scmp.eq.s32.totalorder %s26, 0
      %p346 = por %p344, %p345
      %p347 = scmp.ne.s32.totalorder %s333, %s334
      %p348 = scmp.eq.s32.totalorder %s27, 1
      %p349 = por %p347, %p348
      %p351 = scmp.ne.s32.totalorder %s334, %s350
      %p352 = scmp.eq.s32.totalorder %s27, 0
      %p353 = por %p351, %p352
      %s354 = ssub.s32 %s28, %s40
      %p355 = scmp.eq.s32.totalorder %s354, 0
      %s357 = sadd.s32 %s356, 1
      %s358 = scalar_select %p355, %s356, %s357
      %p361 = pneg %p355
      %p362 = scmp.eq.s32.totalorder %s21, 1
      %p363 = por %p361, %p362
      %p364 = scmp.ne.s32.totalorder %s356, %s359
      %p365 = scmp.eq.s32.totalorder %s21, 0
      %p366 = por %p364, %p365
      %p367 = scmp.ne.s32.totalorder %s356, %s359
      %p368 = scmp.eq.s32.totalorder %s26, 1
      %p369 = por %p367, %p368
      %p370 = scmp.ne.s32.totalorder %s359, %s360
      %p371 = scmp.eq.s32.totalorder %s26, 0
      %p372 = por %p370, %p371
      %p373 = scmp.ne.s32.totalorder %s359, %s360
      %p374 = scmp.eq.s32.totalorder %s27, 1
      %p375 = por %p373, %p374
      %p377 = scmp.ne.s32.totalorder %s360, %s376
      %p378 = scmp.eq.s32.totalorder %s27, 0
      %p379 = por %p377, %p378
      %s381 = sadd.s32 %s380, 1
      %p384 = scmp.eq.s32.totalorder %s21, 1
      %p385 = scmp.ne.s32.totalorder %s380, %s382
      %p386 = scmp.eq.s32.totalorder %s21, 0
      %p387 = por %p385, %p386
      %p388 = scmp.ne.s32.totalorder %s380, %s382
      %p389 = scmp.eq.s32.totalorder %s26, 1
      %p390 = por %p388, %p389
      %p391 = scmp.ne.s32.totalorder %s382, %s383
      %p392 = scmp.eq.s32.totalorder %s26, 0
      %p393 = por %p391, %p392
      %p394 = scmp.ne.s32.totalorder %s382, %s383
      %p395 = scmp.eq.s32.totalorder %s27, 1
      %p396 = por %p394, %p395
      %p398 = scmp.ne.s32.totalorder %s383, %s397
      %p399 = scmp.eq.s32.totalorder %s27, 0
      %p400 = por %p398, %p399
      %p401 = scmp.le.s32.totalorder 1, %s21
      %p402 = scmp.lt.s32.totalorder %s21, 3
      %p403 = pnand %p401, %p402
      %p404 = pneg %p403
      // Predicated region
      $region9: #{tpu_custom_call.1} parent=5 // pred_check
        _
      $region10: #{tpu_custom_call.1} parent=5 // pred_check_branch
        %406 = sbr.rel (%p403) target = $region12
      $region11: #{tpu_custom_call.1} parent=5 // pred_region
        %s407 = ssub.s32 %s21, 1
        // Predicated region
        $region13: #{tpu_custom_call.1} parent=11 // pred_check
          %p408 = pneg %p54
        $region14: #{tpu_custom_call.1} parent=11 // pred_check_branch
          %410 = sbr.rel (%p408) target = $region16
        $region15: #{tpu_custom_call.1} parent=11 // pred_region
          %s412 = ssub.s32 256, 256
          %413 = vsyncadd [#allocation5], %s412
          %s414 = sshll.u32 [#allocation4], 4
          %s415 = int_to_ptr.vmem [resolvable:$true] %s414
          %420 = dma.hbm_to_vmem [thread:$0]  %s0, 256, %s415, [#allocation5], 128, 128, 8
        $region16: #{tpu_custom_call.1} parent=11 // pred_fallthru
          _
      $region12: #{tpu_custom_call.1} parent=5 // pred_fallthru
        _
      %p421 = scmp.lt.s32.totalorder %s21, 2
      // Predicated region
      $region17: #{tpu_custom_call.1} parent=5 // pred_check
        %p422 = pneg %p421
      $region18: #{tpu_custom_call.1} parent=5 // pred_check_branch
        %424 = sbr.rel (%p422) target = $region20
      $region19: #{tpu_custom_call.1} parent=5 // pred_region
        // Predicated region
        $region21: #{tpu_custom_call.1} parent=19 // pred_check
          %p425 = pneg %p74
        $region22: #{tpu_custom_call.1} parent=19 // pred_check_branch
          %427 = sbr.rel (%p425) target = $region24
        $region23: #{tpu_custom_call.1} parent=19 // pred_region
          %p428 = scmp.lt.s32.totalorder %s28, 1
          %s429 = scalar_select %p428, %s28, 1
          %s430 = smul.addr %s429, 4
          %s431 = smul.addr %s430, 8
          %s432 = scalar_lea.vmem %s1, %s431
        $region24: #{tpu_custom_call.1} parent=19 // pred_fallthru
          _
        // Predicated region
        $region25: #{tpu_custom_call.1} parent=19 // pred_check
          %p433 = pneg %p100
        $region26: #{tpu_custom_call.1} parent=19 // pred_check_branch
          %435 = sbr.rel (%p433) target = $region28
        $region27: #{tpu_custom_call.1} parent=19 // pred_region
          %p436 = scmp.lt.s32.totalorder %s28, 1
          %s437 = scalar_select %p436, %s28, 1
          %s438 = scalar_lea.vmem %s2, %s437
        $region28: #{tpu_custom_call.1} parent=19 // pred_fallthru
          _
        // Predicated region
        $region29: #{tpu_custom_call.1} parent=19 // pred_check
          %p439 = pneg %p126
        $region30: #{tpu_custom_call.1} parent=19 // pred_check_branch
          %441 = sbr.rel (%p439) target = $region32
        $region31: #{tpu_custom_call.1} parent=19 // pred_region
          %p442 = scmp.lt.s32.totalorder %s28, 1
          %s443 = scalar_select %p442, %s28, 1
          %s444 = smul.addr %s443, 4
          %s445 = smul.addr %s444, 8
          %s446 = scalar_lea.vmem %s3, %s445
        $region32: #{tpu_custom_call.1} parent=19 // pred_fallthru
          _
        // Predicated region
        $region33: #{tpu_custom_call.1} parent=19 // pred_check
          %p447 = pneg %p152
        $region34: #{tpu_custom_call.1} parent=19 // pred_check_branch
          %449 = sbr.rel (%p447) target = $region36
        $region35: #{tpu_custom_call.1} parent=19 // pred_region
          %p450 = scmp.lt.s32.totalorder %s28, 1
          %s451 = scalar_select %p450, %s28, 1
          %s452 = scalar_lea.vmem %s4, %s451
        $region36: #{tpu_custom_call.1} parent=19 // pred_fallthru
          _
        // Predicated region
        $region37: #{tpu_custom_call.1} parent=19 // pred_check
          %p453 = pneg %p178
        $region38: #{tpu_custom_call.1} parent=19 // pred_check_branch
          %455 = sbr.rel (%p453) target = $region40
        $region39: #{tpu_custom_call.1} parent=19 // pred_region
          %p456 = scmp.lt.s32.totalorder %s28, 1
          %s457 = scalar_select %p456, %s28, 1
          %s458 = scalar_lea.vmem %s5, %s457
        $region40: #{tpu_custom_call.1} parent=19 // pred_fallthru
          _
        // Predicated region
        $region41: #{tpu_custom_call.1} parent=19 // pred_check
          %p459 = pneg %p204
        $region42: #{tpu_custom_call.1} parent=19 // pred_check_branch
          %461 = sbr.rel (%p459) target = $region44
        $region43: #{tpu_custom_call.1} parent=19 // pred_region
          %p462 = scmp.lt.s32.totalorder %s28, 1
          %s463 = scalar_select %p462, %s28, 1
          %s464 = scalar_lea.vmem %s6, %s463
        $region44: #{tpu_custom_call.1} parent=19 // pred_fallthru
          _
        // Predicated region
        $region45: #{tpu_custom_call.1} parent=19 // pred_check
          %p465 = pneg %p232
        $region46: #{tpu_custom_call.1} parent=19 // pred_check_branch
          %467 = sbr.rel (%p465) target = $region48
        $region47: #{tpu_custom_call.1} parent=19 // pred_region
          %p468 = scmp.lt.s32.totalorder %s28, 1
          %s469 = scalar_select %p468, %s28, 1
          %p470 = scmp.lt.s32.totalorder %s29, 0
          %s471 = scalar_select %p470, %s29, 0
          %s472 = smul.addr %s469, 4
          %s473 = sadd.s32 %s471, %s472
          %s474 = smul.addr %s473, 8
          %s475 = scalar_lea.vmem %s7, %s474
        $region48: #{tpu_custom_call.1} parent=19 // pred_fallthru
          _
        // Predicated region
        $region49: #{tpu_custom_call.1} parent=19 // pred_check
          %p476 = pneg %p260
        $region50: #{tpu_custom_call.1} parent=19 // pred_check_branch
          %478 = sbr.rel (%p476) target = $region52
        $region51: #{tpu_custom_call.1} parent=19 // pred_region
          %p479 = scmp.lt.s32.totalorder %s28, 1
          %s480 = scalar_select %p479, %s28, 1
          %p481 = scmp.lt.s32.totalorder %s29, 0
          %s482 = scalar_select %p481, %s29, 0
          %s483 = sadd.s32 %s482, %s480
          %s484 = scalar_lea.vmem %s8, %s483
        $region52: #{tpu_custom_call.1} parent=19 // pred_fallthru
          _
        // Predicated region
        $region53: #{tpu_custom_call.1} parent=19 // pred_check
          %p485 = pneg %p288
        $region54: #{tpu_custom_call.1} parent=19 // pred_check_branch
          %487 = sbr.rel (%p485) target = $region56
        $region55: #{tpu_custom_call.1} parent=19 // pred_region
          %s488 = smul.u32 8, %s29
          %p489 = scmp.lt.s32.totalorder %s28, 1
          %s490 = scalar_select %p489, %s28, 1
          %p491 = scmp.lt.s32.totalorder %s488, 7
          %s492 = scalar_select %p491, %s488, 7
          %s493 = smul.addr %s490, 8
          %s494 = sadd.s32 %s492, %s493
          %s495 = smul.addr %s494, 8
          %s496 = scalar_lea.vmem %s9, %s495
          %s497 = smul.u32 8, %s29
        $region56: #{tpu_custom_call.1} parent=19 // pred_fallthru
          _
        // Predicated region
        $region57: #{tpu_custom_call.1} parent=19 // pred_check
          %p498 = pneg %p314
        $region58: #{tpu_custom_call.1} parent=19 // pred_check_branch
          %500 = sbr.rel (%p498) target = $region60
        $region59: #{tpu_custom_call.1} parent=19 // pred_region
          %p501 = scmp.lt.s32.totalorder %s28, 1
          %s502 = scalar_select %p501, %s28, 1
          %s503 = scalar_lea.vmem %s10, %s502
        $region60: #{tpu_custom_call.1} parent=19 // pred_fallthru
          _
        // Predicated region
        $region61: #{tpu_custom_call.1} parent=19 // pred_check
          %p504 = pneg %p340
        $region62: #{tpu_custom_call.1} parent=19 // pred_check_branch
          %506 = sbr.rel (%p504) target = $region64
        $region63: #{tpu_custom_call.1} parent=19 // pred_region
          %p507 = scmp.lt.s32.totalorder %s28, 1
          %s508 = scalar_select %p507, %s28, 1
          %s509 = scalar_lea.vmem %s11, %s508
        $region64: #{tpu_custom_call.1} parent=19 // pred_fallthru
          _
        // Predicated region
        $region65: #{tpu_custom_call.1} parent=19 // pred_check
          %p510 = pneg %p366
        $region66: #{tpu_custom_call.1} parent=19 // pred_check_branch
          %512 = sbr.rel (%p510) target = $region68
        $region67: #{tpu_custom_call.1} parent=19 // pred_region
          %p513 = scmp.lt.s32.totalorder %s28, 1
          %s514 = scalar_select %p513, %s28, 1
          %s515 = scalar_lea.vmem %s12, %s514
        $region68: #{tpu_custom_call.1} parent=19 // pred_fallthru
          _
      $region20: #{tpu_custom_call.1} parent=5 // pred_fallthru
        _
      %p516 = scmp.le.s32.totalorder 1, %s21
      %p517 = scmp.lt.s32.totalorder %s21, 3
      %p518 = pnand %p516, %p517
      %p519 = pneg %p518
      // Predicated region
      $region69: #{tpu_custom_call.1} parent=5 // pred_check
        _
      $region70: #{tpu_custom_call.1} parent=5 // pred_check_branch
        %521 = sbr.rel (%p518) target = $region72
      $region71: #{tpu_custom_call.1} parent=5 // pred_region
        %s522 = ssub.s32 %s21, 1
        // Predicated region
        $region73: #{tpu_custom_call.1} parent=71 // pred_check
          %p523 = pneg %p54
        $region74: #{tpu_custom_call.1} parent=71 // pred_check_branch
          %525 = sbr.rel (%p523) target = $region76
        $region75: #{tpu_custom_call.1} parent=71 // pred_region
          %526 = dma.done [#allocation5], 256
        $region76: #{tpu_custom_call.1} parent=71 // pred_fallthru
          _
        %p527 = pneg %p54
        %p528 = pneg %p51
        %p529 = scmp.lt.s32.totalorder %s30, 1
        %s530 = scalar_select %p529, %s30, 1
        %s531 = smul.addr %s530, 4
        %s532 = smul.addr %s531, 8
        %s533 = scalar_lea.vmem %s1, %s532
        %p534 = pneg %p80
        %p535 = pneg %p77
        %p536 = scmp.lt.s32.totalorder %s30, 1
        %s537 = scalar_select %p536, %s30, 1
        %s538 = scalar_lea.vmem %s2, %s537
        %p539 = pneg %p106
        %p540 = pneg %p103
        %p541 = scmp.lt.s32.totalorder %s30, 1
        %s542 = scalar_select %p541, %s30, 1
        %s543 = smul.addr %s542, 4
        %s544 = smul.addr %s543, 8
        %s545 = scalar_lea.vmem %s3, %s544
        %p546 = pneg %p132
        %p547 = pneg %p129
        %p548 = scmp.lt.s32.totalorder %s30, 1
        %s549 = scalar_select %p548, %s30, 1
        %s550 = scalar_lea.vmem %s4, %s549
        %p551 = pneg %p158
        %p552 = pneg %p155
        %p553 = scmp.lt.s32.totalorder %s30, 1
        %s554 = scalar_select %p553, %s30, 1
        %s555 = scalar_lea.vmem %s5, %s554
        %p556 = pneg %p184
        %p557 = pneg %p181
        %p558 = scmp.lt.s32.totalorder %s30, 1
        %s559 = scalar_select %p558, %s30, 1
        %s560 = scalar_lea.vmem %s6, %s559
        %p561 = pneg %p210
        %p562 = pneg %p207
        %p563 = scmp.lt.s32.totalorder %s30, 1
        %s564 = scalar_select %p563, %s30, 1
        %p565 = scmp.lt.s32.totalorder %s31, 0
        %s566 = scalar_select %p565, %s31, 0
        %s567 = smul.addr %s564, 4
        %s568 = sadd.s32 %s566, %s567
        %s569 = smul.addr %s568, 8
        %s570 = scalar_lea.vmem %s7, %s569
        %p571 = pneg %p238
        %p572 = pneg %p235
        %p573 = scmp.lt.s32.totalorder %s30, 1
        %s574 = scalar_select %p573, %s30, 1
        %p575 = scmp.lt.s32.totalorder %s31, 0
        %s576 = scalar_select %p575, %s31, 0
        %s577 = sadd.s32 %s576, %s574
        %s578 = scalar_lea.vmem %s8, %s577
        %p579 = pneg %p266
        %p580 = pneg %p263
        %s581 = smul.u32 8, %s31
        %p582 = scmp.lt.s32.totalorder %s30, 1
        %s583 = scalar_select %p582, %s30, 1
        %p584 = scmp.lt.s32.totalorder %s581, 7
        %s585 = scalar_select %p584, %s581, 7
        %s586 = smul.addr %s583, 8
        %s587 = sadd.s32 %s585, %s586
        %s588 = smul.addr %s587, 8
        %s589 = scalar_lea.vmem %s9, %s588
        %p590 = pneg %p294
        %p591 = pneg %p291
        %p592 = scmp.lt.s32.totalorder %s30, 1
        %s593 = scalar_select %p592, %s30, 1
        %s594 = scalar_lea.vmem %s10, %s593
        %p595 = pneg %p320
        %p596 = pneg %p317
        %p597 = scmp.lt.s32.totalorder %s30, 1
        %s598 = scalar_select %p597, %s30, 1
        %s599 = scalar_lea.vmem %s11, %s598
        %p600 = pneg %p346
        %p601 = pneg %p343
        %p602 = scmp.lt.s32.totalorder %s30, 1
        %s603 = scalar_select %p602, %s30, 1
        %s604 = scalar_lea.vmem %s12, %s603
        %p605 = pneg %p372
        %p606 = pneg %p369
        %p607 = pneg %p393
        %p608 = pneg %p390
        %p609 = scmp.lt.s32.totalorder %s30, 1
        %s610 = scalar_select %p609, %s30, 1
        %s611 = smul.addr %s610, 4
        %s612 = smul.addr %s611, 8
        %s613 = scalar_lea.vmem %s1, %s612
        %p614 = scmp.lt.s32.totalorder %s30, 1
        %s615 = scalar_select %p614, %s30, 1
        %s616 = scalar_lea.vmem %s2, %s615
        %p617 = scmp.lt.s32.totalorder %s30, 1
        %s618 = scalar_select %p617, %s30, 1
        %s619 = smul.addr %s618, 4
        %s620 = smul.addr %s619, 8
        %s621 = scalar_lea.vmem %s3, %s620
        %p622 = scmp.lt.s32.totalorder %s30, 1
        %s623 = scalar_select %p622, %s30, 1
        %s624 = scalar_lea.vmem %s4, %s623
        %p625 = scmp.lt.s32.totalorder %s30, 1
        %s626 = scalar_select %p625, %s30, 1
        %s627 = scalar_lea.vmem %s5, %s626
        %p628 = scmp.lt.s32.totalorder %s30, 1
        %s629 = scalar_select %p628, %s30, 1
        %s630 = scalar_lea.vmem %s6, %s629
        %p631 = scmp.lt.s32.totalorder %s30, 1
        %s632 = scalar_select %p631, %s30, 1
        %p633 = scmp.lt.s32.totalorder %s31, 0
        %s634 = scalar_select %p633, %s31, 0
        %s635 = smul.addr %s632, 4
        %s636 = sadd.s32 %s634, %s635
        %s637 = smul.addr %s636, 8
        %s638 = scalar_lea.vmem %s7, %s637
        %p639 = scmp.lt.s32.totalorder %s30, 1
        %s640 = scalar_select %p639, %s30, 1
        %p641 = scmp.lt.s32.totalorder %s31, 0
        %s642 = scalar_select %p641, %s31, 0
        %s643 = sadd.s32 %s642, %s640
        %s644 = scalar_lea.vmem %s8, %s643
        %s645 = smul.u32 8, %s31
        %p646 = scmp.lt.s32.totalorder %s30, 1
        %s647 = scalar_select %p646, %s30, 1
        %p648 = scmp.lt.s32.totalorder %s645, 7
        %s649 = scalar_select %p648, %s645, 7
        %s650 = smul.addr %s647, 8
        %s651 = sadd.s32 %s649, %s650
        %s652 = smul.addr %s651, 8
        %s653 = scalar_lea.vmem %s9, %s652
        %s654 = smul.u32 8, %s31
        %p655 = scmp.lt.s32.totalorder %s30, 1
        %s656 = scalar_select %p655, %s30, 1
        %s657 = scalar_lea.vmem %s10, %s656
        %p658 = scmp.lt.s32.totalorder %s30, 1
        %s659 = scalar_select %p658, %s30, 1
        %s660 = scalar_lea.vmem %s11, %s659
        %p661 = scmp.lt.s32.totalorder %s30, 1
        %s662 = scalar_select %p661, %s30, 1
        %s663 = scalar_lea.vmem %s12, %s662
        %p664 = scmp.eq.s32.totalorder %s30, 0
        %p665 = scmp.eq.s32.totalorder %s31, 0
        %p666 = pnand %p664, %p665
        %p667 = pneg %p666
        // Predicated region
        $region77: #{tpu_custom_call.1} parent=71 // pred_check
          _
        $region78: #{tpu_custom_call.1} parent=71 // pred_check_branch
          %669 = sbr.rel (%p666) target = $region80
        $region79: #{tpu_custom_call.1} parent=71 // pred_region
          %v670 = vld [vmem:[#allocation4] sm:$0xff]
          %v671 = vld [vmem:[#allocation4 + $0x8] sm:$0xff]
          %vm672 = vcmask 261120
          %673 = vst.msk [vmem:[#allocation2] sm:$0xff] %vm672, %v670
          %674 = vst.msk [vmem:[#allocation2 + $0x8] sm:$0xff] %vm672, %v671
        $region80: #{tpu_custom_call.1} parent=71 // pred_fallthru
          _
        // Predicated region
        $region81: #{tpu_custom_call.1} parent=71 // pred_check
          %p675 = pneg %p665
        $region82: #{tpu_custom_call.1} parent=71 // pred_check_branch
          %677 = sbr.rel (%p675) target = $region84
        $region83: #{tpu_custom_call.1} parent=71 // pred_region
          %v678 = vld [vmem:[#allocation2] sm:$0xff]
          %v679 = vld [vmem:[#allocation2 + $0x8] sm:$0xff]
          %v680 = vld [vmem:[%s613] sm:$0xff]
          %v681 = vld [vmem:[%s613 + $0x8] sm:$0xff]
          %v682 = vld [vmem:[%s613 + $0x10] sm:$0xff]
          %v683 = vld [vmem:[%s613 + $0x18] sm:$0xff]
          %v684 = vld [vmem:[%s616] sm:$0x1]
          %v686 = vlaneseq
          %v687 = vshrl.u32 %v686, 7
          %v688 = vsub.s32 0, %v687
          %v689 = vrot.slane %v684, %v688
          %vm691 = vcmask 261120
          %v693 = vsel %vm691, %v678, 0
          %v696 = vsel %vm691, %v679, 0
          %698 = vmatprep.subr.mxu0 0.0
          %699 = vmatpush1.msra.mxu0 0.0
          %700 = vmatprep.subr.mxu0 0.0
          %701 = vmatpush1.msra.mxu0 0.0
          %702 = vmatprep.subr.mxu0 0.0
          %703 = vmatpush1.msra.mxu0 0.0
          %704 = vmatprep.subr.mxu0 0.0
          %705 = vmatpush1.msra.mxu0 0.0
          %706 = vmatprep.subr.mxu0 0.0
          %707 = vmatpush1.msra.mxu0 0.0
          %708 = vmatprep.subr.mxu0 0.0
          %709 = vmatpush1.msra.mxu0 0.0
          %710 = vmatprep.subr.mxu0 0.0
          %711 = vmatpush1.msra.mxu0 0.0
          %712 = vmatprep.subr.mxu0 0.0
          %713 = vmatpush1.msra.mxu0 0.0
          %714 = vmatprep.subr.mxu0 0.0
          %715 = vmatpush1.msra.mxu0 0.0
          %716 = vmatprep.subr.mxu0 0.0
          %717 = vmatpush1.msra.mxu0 0.0
          %718 = vmatprep.subr.mxu0 0.0
          %719 = vmatpush1.msra.mxu0 0.0
          %720 = vmatprep.subr.mxu0 0.0
          %721 = vmatpush1.msra.mxu0 0.0
          %722 = vmatprep.subr.mxu0 0.0
          %723 = vmatpush1.msra.mxu0 %v683
          %724 = vmatprep.subr.mxu0 0.0
          %725 = vmatpush1.msra.mxu0 %v682
          %726 = vmatprep.subr.mxu0 0.0
          %727 = vmatpush1.msra.mxu0 %v681
          %728 = vmatprep.subr.mxu0 0.0
          %729 = vmatpush1.msra.mxu0 %v680
          %730 = vmatprep.subr.mxu0 0.0
          %731 = vmatpush2.msra.mxu0 0.0
          %732 = vmatprep.subr.mxu0 0.0
          %733 = vmatpush2.msra.mxu0 0.0
          %734 = vmatprep.subr.mxu0 0.0
          %735 = vmatpush2.msra.mxu0 0.0
          %736 = vmatprep.subr.mxu0 0.0
          %737 = vmatpush2.msra.mxu0 0.0
          %738 = vmatprep.subr.mxu0 0.0
          %739 = vmatpush2.msra.mxu0 0.0
          %740 = vmatprep.subr.mxu0 0.0
          %741 = vmatpush2.msra.mxu0 0.0
          %742 = vmatprep.subr.mxu0 0.0
          %743 = vmatpush2.msra.mxu0 0.0
          %744 = vmatprep.subr.mxu0 0.0
          %745 = vmatpush2.msra.mxu0 0.0
          %746 = vmatprep.subr.mxu0 0.0
          %747 = vmatpush2.msra.mxu0 0.0
          %748 = vmatprep.subr.mxu0 0.0
          %749 = vmatpush2.msra.mxu0 0.0
          %750 = vmatprep.subr.mxu0 0.0
          %751 = vmatpush2.msra.mxu0 0.0
          %752 = vmatprep.subr.mxu0 0.0
          %753 = vmatpush2.msra.mxu0 0.0
          %754 = vmatprep.subr.mxu0 0.0
          %755 = vmatpush2.msra.mxu0 0.0
          %756 = vmatprep.subr.mxu0 0.0
          %757 = vmatpush2.msra.mxu0 0.0
          %758 = vmatprep.subr.mxu0 0.0
          %759 = vmatpush2.msra.mxu0 0.0
          %760 = vmatprep.subr.mxu0 0.0
          %761 = vmatpush2.msra.mxu0 0.0
          %762 = vmatprep.mubr.f32.mxu0 0.0
          %763 = vmatmul.mubr.f32.gmra.mxu0 %v693
          %v764 = vpop.f32.mrf.mxu0
          %v765 = vadd.f32 %v689, %v764
          %v766 = vpop.f32.mrf.mxu0
          %767 = vmatprep.mubr.f32.mxu0 0.0
          %768 = vmatmul.mubr.f32.gmra.mxu0 %v696
          %v769 = vpop.f32.mrf.mxu0
          %v770 = vadd.f32 %v689, %v769
          %v771 = vpop.f32.mrf.mxu0
          %772 = vdwg.mxu0
          %775 = vrot.lane.b32.xlu0 %v765, 120
          %v776 = vpop.permute.xlu0 %775
          %777 = vrot.lane.b32.xlu0 %v770, 120
          %v778 = vpop.permute.xlu0 %777
          %779 = vrot.lane.b32.xlu0 %v765, 112
          %v780 = vpop.permute.xlu0 %779
          %781 = vrot.lane.b32.xlu0 %v770, 112
          %v782 = vpop.permute.xlu0 %781
          %783 = vrot.lane.b32.xlu0 %v765, 104
          %v784 = vpop.permute.xlu0 %783
          %785 = vrot.lane.b32.xlu0 %v770, 104
          %v786 = vpop.permute.xlu0 %785
          %787 = vrot.lane.b32.xlu0 %v765, 96
          %v788 = vpop.permute.xlu0 %787
          %vm789 = vcmask 64512
          %v790 = vsel %vm789, %v765, 0
          %v792 = vsel %vm789, %v788, 0
          %794 = vmatprep.subr.mxu0 0.0
          %795 = vmatpush1.xpose.msra.mxu0 0.0
          %796 = vmatprep.subr.mxu0 0.0
          %797 = vmatpush1.xpose.msra.mxu0 0.0
          %798 = vmatprep.subr.mxu0 0.0
          %799 = vmatpush1.xpose.msra.mxu0 0.0
          %800 = vmatprep.subr.mxu0 0.0
          %801 = vmatpush1.xpose.msra.mxu0 0.0
          %802 = vmatprep.subr.mxu0 0.0
          %803 = vmatpush1.xpose.msra.mxu0 0.0
          %804 = vmatprep.subr.mxu0 0.0
          %805 = vmatpush1.xpose.msra.mxu0 0.0
          %806 = vmatprep.subr.mxu0 0.0
          %807 = vmatpush1.xpose.msra.mxu0 0.0
          %808 = vmatprep.subr.mxu0 0.0
          %809 = vmatpush1.xpose.msra.mxu0 0.0
          %810 = vmatprep.subr.mxu0 0.0
          %811 = vmatpush1.xpose.msra.mxu0 0.0
          %812 = vmatprep.subr.mxu0 0.0
          %813 = vmatpush1.xpose.msra.mxu0 0.0
          %814 = vmatprep.subr.mxu0 0.0
          %815 = vmatpush1.xpose.msra.mxu0 0.0
          %816 = vmatprep.subr.mxu0 0.0
          %817 = vmatpush1.xpose.msra.mxu0 0.0
          %818 = vmatprep.subr.mxu0 0.0
          %819 = vmatpush1.xpose.msra.mxu0 0.0
          %820 = vmatprep.subr.mxu0 0.0
          %821 = vmatpush1.xpose.msra.mxu0 0.0
          %822 = vmatprep.subr.mxu0 0.0
          %823 = vmatpush1.xpose.msra.mxu0 0.0
          %824 = vmatprep.subr.mxu0 0.0
          %825 = vmatpush1.xpose.msra.mxu0 %v792
          %826 = vmatprep.subr.mxu0 0.0
          %827 = vmatpush2.xpose.msra.mxu0 0.0
          %828 = vmatprep.subr.mxu0 0.0
          %829 = vmatpush2.xpose.msra.mxu0 0.0
          %830 = vmatprep.subr.mxu0 0.0
          %831 = vmatpush2.xpose.msra.mxu0 0.0
          %832 = vmatprep.subr.mxu0 0.0
          %833 = vmatpush2.xpose.msra.mxu0 0.0
          %834 = vmatprep.subr.mxu0 0.0
          %835 = vmatpush2.xpose.msra.mxu0 0.0
          %836 = vmatprep.subr.mxu0 0.0
          %837 = vmatpush2.xpose.msra.mxu0 0.0
          %838 = vmatprep.subr.mxu0 0.0
          %839 = vmatpush2.xpose.msra.mxu0 0.0
          %840 = vmatprep.subr.mxu0 0.0
          %841 = vmatpush2.xpose.msra.mxu0 0.0
          %842 = vmatprep.subr.mxu0 0.0
          %843 = vmatpush2.xpose.msra.mxu0 0.0
          %844 = vmatprep.subr.mxu0 0.0
          %845 = vmatpush2.xpose.msra.mxu0 0.0
          %846 = vmatprep.subr.mxu0 0.0
          %847 = vmatpush2.xpose.msra.mxu0 0.0
          %848 = vmatprep.subr.mxu0 0.0
          %849 = vmatpush2.xpose.msra.mxu0 0.0
          %850 = vmatprep.subr.mxu0 0.0
          %851 = vmatpush2.xpose.msra.mxu0 0.0
          %852 = vmatprep.subr.mxu0 0.0
          %853 = vmatpush2.xpose.msra.mxu0 0.0
          %854 = vmatprep.subr.mxu0 0.0
          %855 = vmatpush2.xpose.msra.mxu0 0.0
          %856 = vmatprep.subr.mxu0 0.0
          %857 = vmatpush2.xpose.msra.mxu0 0.0
          %858 = vmatprep.mubr.f32.mxu0 0.0
          %859 = vmatmul.mubr.f32.gmra.mxu0 %v790
          %v860 = vpop.f32.mrf.mxu0
          %v861 = vadd.f32 0.0, %v860
          %v862 = vpop.f32.mrf.mxu0
          %863 = vdwg.mxu0
          %864 = vrot.lane.b32.xlu0 %v770, 96
          %v865 = vpop.permute.xlu0 %864
          %v866 = vsel %vm789, %v770, 0
          %v868 = vsel %vm789, %v865, 0
          %870 = vmatprep.subr.mxu0 0.0
          %871 = vmatpush1.xpose.msra.mxu0 0.0
          %872 = vmatprep.subr.mxu0 0.0
          %873 = vmatpush1.xpose.msra.mxu0 0.0
          %874 = vmatprep.subr.mxu0 0.0
          %875 = vmatpush1.xpose.msra.mxu0 0.0
          %876 = vmatprep.subr.mxu0 0.0
          %877 = vmatpush1.xpose.msra.mxu0 0.0
          %878 = vmatprep.subr.mxu0 0.0
          %879 = vmatpush1.xpose.msra.mxu0 0.0
          %880 = vmatprep.subr.mxu0 0.0
          %881 = vmatpush1.xpose.msra.mxu0 0.0
          %882 = vmatprep.subr.mxu0 0.0
          %883 = vmatpush1.xpose.msra.mxu0 0.0
          %884 = vmatprep.subr.mxu0 0.0
          %885 = vmatpush1.xpose.msra.mxu0 0.0
          %886 = vmatprep.subr.mxu0 0.0
          %887 = vmatpush1.xpose.msra.mxu0 0.0
          %888 = vmatprep.subr.mxu0 0.0
          %889 = vmatpush1.xpose.msra.mxu0 0.0
          %890 = vmatprep.subr.mxu0 0.0
          %891 = vmatpush1.xpose.msra.mxu0 0.0
          %892 = vmatprep.subr.mxu0 0.0
          %893 = vmatpush1.xpose.msra.mxu0 0.0
          %894 = vmatprep.subr.mxu0 0.0
          %895 = vmatpush1.xpose.msra.mxu0 0.0
          %896 = vmatprep.subr.mxu0 0.0
          %897 = vmatpush1.xpose.msra.mxu0 0.0
          %898 = vmatprep.subr.mxu0 0.0
          %899 = vmatpush1.xpose.msra.mxu0 0.0
          %900 = vmatprep.subr.mxu0 0.0
          %901 = vmatpush1.xpose.msra.mxu0 %v868
          %902 = vmatprep.subr.mxu0 0.0
          %903 = vmatpush2.xpose.msra.mxu0 0.0
          %904 = vmatprep.subr.mxu0 0.0
          %905 = vmatpush2.xpose.msra.mxu0 0.0
          %906 = vmatprep.subr.mxu0 0.0
          %907 = vmatpush2.xpose.msra.mxu0 0.0
          %908 = vmatprep.subr.mxu0 0.0
          %909 = vmatpush2.xpose.msra.mxu0 0.0
          %910 = vmatprep.subr.mxu0 0.0
          %911 = vmatpush2.xpose.msra.mxu0 0.0
          %912 = vmatprep.subr.mxu0 0.0
          %913 = vmatpush2.xpose.msra.mxu0 0.0
          %914 = vmatprep.subr.mxu0 0.0
          %915 = vmatpush2.xpose.msra.mxu0 0.0
          %916 = vmatprep.subr.mxu0 0.0
          %917 = vmatpush2.xpose.msra.mxu0 0.0
          %918 = vmatprep.subr.mxu0 0.0
          %919 = vmatpush2.xpose.msra.mxu0 0.0
          %920 = vmatprep.subr.mxu0 0.0
          %921 = vmatpush2.xpose.msra.mxu0 0.0
          %922 = vmatprep.subr.mxu0 0.0
          %923 = vmatpush2.xpose.msra.mxu0 0.0
          %924 = vmatprep.subr.mxu0 0.0
          %925 = vmatpush2.xpose.msra.mxu0 0.0
          %926 = vmatprep.subr.mxu0 0.0
          %927 = vmatpush2.xpose.msra.mxu0 0.0
          %928 = vmatprep.subr.mxu0 0.0
          %929 = vmatpush2.xpose.msra.mxu0 0.0
          %930 = vmatprep.subr.mxu0 0.0
          %931 = vmatpush2.xpose.msra.mxu0 0.0
          %932 = vmatprep.subr.mxu0 0.0
          %933 = vmatpush2.xpose.msra.mxu0 0.0
          %934 = vmatprep.mubr.f32.mxu0 0.0
          %935 = vmatmul.mubr.f32.gmra.mxu0 %v866
          %v936 = vpop.f32.mrf.mxu0
          %v937 = vadd.f32 0.0, %v936
          %v938 = vpop.f32.mrf.mxu0
          %939 = vdwg.mxu0
          %940 = vrot.lane.b32.xlu0 %v776, 96
          %v941 = vpop.permute.xlu0 %940
          %v942 = vsel %vm789, %v776, 0
          %v944 = vsel %vm789, %v941, 0
          %946 = vmatprep.subr.mxu0 0.0
          %947 = vmatpush1.xpose.msra.mxu0 0.0
          %948 = vmatprep.subr.mxu0 0.0
          %949 = vmatpush1.xpose.msra.mxu0 0.0
          %950 = vmatprep.subr.mxu0 0.0
          %951 = vmatpush1.xpose.msra.mxu0 0.0
          %952 = vmatprep.subr.mxu0 0.0
          %953 = vmatpush1.xpose.msra.mxu0 0.0
          %954 = vmatprep.subr.mxu0 0.0
          %955 = vmatpush1.xpose.msra.mxu0 0.0
          %956 = vmatprep.subr.mxu0 0.0
          %957 = vmatpush1.xpose.msra.mxu0 0.0
          %958 = vmatprep.subr.mxu0 0.0
          %959 = vmatpush1.xpose.msra.mxu0 0.0
          %960 = vmatprep.subr.mxu0 0.0
          %961 = vmatpush1.xpose.msra.mxu0 0.0
          %962 = vmatprep.subr.mxu0 0.0
          %963 = vmatpush1.xpose.msra.mxu0 0.0
          %964 = vmatprep.subr.mxu0 0.0
          %965 = vmatpush1.xpose.msra.mxu0 0.0
          %966 = vmatprep.subr.mxu0 0.0
          %967 = vmatpush1.xpose.msra.mxu0 0.0
          %968 = vmatprep.subr.mxu0 0.0
          %969 = vmatpush1.xpose.msra.mxu0 0.0
          %970 = vmatprep.subr.mxu0 0.0
          %971 = vmatpush1.xpose.msra.mxu0 0.0
          %972 = vmatprep.subr.mxu0 0.0
          %973 = vmatpush1.xpose.msra.mxu0 0.0
          %974 = vmatprep.subr.mxu0 0.0
          %975 = vmatpush1.xpose.msra.mxu0 0.0
          %976 = vmatprep.subr.mxu0 0.0
          %977 = vmatpush1.xpose.msra.mxu0 %v944
          %978 = vmatprep.subr.mxu0 0.0
          %979 = vmatpush2.xpose.msra.mxu0 0.0
          %980 = vmatprep.subr.mxu0 0.0
          %981 = vmatpush2.xpose.msra.mxu0 0.0
          %982 = vmatprep.subr.mxu0 0.0
          %983 = vmatpush2.xpose.msra.mxu0 0.0
          %984 = vmatprep.subr.mxu0 0.0
          %985 = vmatpush2.xpose.msra.mxu0 0.0
          %986 = vmatprep.subr.mxu0 0.0
          %987 = vmatpush2.xpose.msra.mxu0 0.0
          %988 = vmatprep.subr.mxu0 0.0
          %989 = vmatpush2.xpose.msra.mxu0 0.0
          %990 = vmatprep.subr.mxu0 0.0
          %991 = vmatpush2.xpose.msra.mxu0 0.0
          %992 = vmatprep.subr.mxu0 0.0
          %993 = vmatpush2.xpose.msra.mxu0 0.0
          %994 = vmatprep.subr.mxu0 0.0
          %995 = vmatpush2.xpose.msra.mxu0 0.0
          %996 = vmatprep.subr.mxu0 0.0
          %997 = vmatpush2.xpose.msra.mxu0 0.0
          %998 = vmatprep.subr.mxu0 0.0
          %999 = vmatpush2.xpose.msra.mxu0 0.0
          %1000 = vmatprep.subr.mxu0 0.0
          %1001 = vmatpush2.xpose.msra.mxu0 0.0
          %1002 = vmatprep.subr.mxu0 0.0
          %1003 = vmatpush2.xpose.msra.mxu0 0.0
          %1004 = vmatprep.subr.mxu0 0.0
          %1005 = vmatpush2.xpose.msra.mxu0 0.0
          %1006 = vmatprep.subr.mxu0 0.0
          %1007 = vmatpush2.xpose.msra.mxu0 0.0
          %1008 = vmatprep.subr.mxu0 0.0
          %1009 = vmatpush2.xpose.msra.mxu0 0.0
          %1010 = vmatprep.mubr.f32.mxu0 0.0
          %1011 = vmatmul.mubr.f32.gmra.mxu0 %v942
          %v1012 = vpop.f32.mrf.mxu0
          %v1013 = vadd.f32 0.0, %v1012
          %v1014 = vpop.f32.mrf.mxu0
          %1015 = vdwg.mxu0
          %1016 = vrot.lane.b32.xlu0 %v778, 96
          %v1017 = vpop.permute.xlu0 %1016
          %v1018 = vsel %vm789, %v778, 0
          %v1020 = vsel %vm789, %v1017, 0
          %1022 = vmatprep.subr.mxu0 0.0
          %1023 = vmatpush1.xpose.msra.mxu0 0.0
          %1024 = vmatprep.subr.mxu0 0.0
          %1025 = vmatpush1.xpose.msra.mxu0 0.0
          %1026 = vmatprep.subr.mxu0 0.0
          %1027 = vmatpush1.xpose.msra.mxu0 0.0
          %1028 = vmatprep.subr.mxu0 0.0
          %1029 = vmatpush1.xpose.msra.mxu0 0.0
          %1030 = vmatprep.subr.mxu0 0.0
          %1031 = vmatpush1.xpose.msra.mxu0 0.0
          %1032 = vmatprep.subr.mxu0 0.0
          %1033 = vmatpush1.xpose.msra.mxu0 0.0
          %1034 = vmatprep.subr.mxu0 0.0
          %1035 = vmatpush1.xpose.msra.mxu0 0.0
          %1036 = vmatprep.subr.mxu0 0.0
          %1037 = vmatpush1.xpose.msra.mxu0 0.0
          %1038 = vmatprep.subr.mxu0 0.0
          %1039 = vmatpush1.xpose.msra.mxu0 0.0
          %1040 = vmatprep.subr.mxu0 0.0
          %1041 = vmatpush1.xpose.msra.mxu0 0.0
          %1042 = vmatprep.subr.mxu0 0.0
          %1043 = vmatpush1.xpose.msra.mxu0 0.0
          %1044 = vmatprep.subr.mxu0 0.0
          %1045 = vmatpush1.xpose.msra.mxu0 0.0
          %1046 = vmatprep.subr.mxu0 0.0
          %1047 = vmatpush1.xpose.msra.mxu0 0.0
          %1048 = vmatprep.subr.mxu0 0.0
          %1049 = vmatpush1.xpose.msra.mxu0 0.0
          %1050 = vmatprep.subr.mxu0 0.0
          %1051 = vmatpush1.xpose.msra.mxu0 0.0
          %1052 = vmatprep.subr.mxu0 0.0
          %1053 = vmatpush1.xpose.msra.mxu0 %v1020
          %1054 = vmatprep.subr.mxu0 0.0
          %1055 = vmatpush2.xpose.msra.mxu0 0.0
          %1056 = vmatprep.subr.mxu0 0.0
          %1057 = vmatpush2.xpose.msra.mxu0 0.0
          %1058 = vmatprep.subr.mxu0 0.0
          %1059 = vmatpush2.xpose.msra.mxu0 0.0
          %1060 = vmatprep.subr.mxu0 0.0
          %1061 = vmatpush2.xpose.msra.mxu0 0.0
          %1062 = vmatprep.subr.mxu0 0.0
          %1063 = vmatpush2.xpose.msra.mxu0 0.0
          %1064 = vmatprep.subr.mxu0 0.0
          %1065 = vmatpush2.xpose.msra.mxu0 0.0
          %1066 = vmatprep.subr.mxu0 0.0
          %1067 = vmatpush2.xpose.msra.mxu0 0.0
          %1068 = vmatprep.subr.mxu0 0.0
          %1069 = vmatpush2.xpose.msra.mxu0 0.0
          %1070 = vmatprep.subr.mxu0 0.0
          %1071 = vmatpush2.xpose.msra.mxu0 0.0
          %1072 = vmatprep.subr.mxu0 0.0
          %1073 = vmatpush2.xpose.msra.mxu0 0.0
          %1074 = vmatprep.subr.mxu0 0.0
          %1075 = vmatpush2.xpose.msra.mxu0 0.0
          %1076 = vmatprep.subr.mxu0 0.0
          %1077 = vmatpush2.xpose.msra.mxu0 0.0
          %1078 = vmatprep.subr.mxu0 0.0
          %1079 = vmatpush2.xpose.msra.mxu0 0.0
          %1080 = vmatprep.subr.mxu0 0.0
          %1081 = vmatpush2.xpose.msra.mxu0 0.0
          %1082 = vmatprep.subr.mxu0 0.0
          %1083 = vmatpush2.xpose.msra.mxu0 0.0
          %1084 = vmatprep.subr.mxu0 0.0
          %1085 = vmatpush2.xpose.msra.mxu0 0.0
          %1086 = vmatprep.mubr.f32.mxu0 0.0
          %1087 = vmatmul.mubr.f32.gmra.mxu0 %v1018
          %v1088 = vpop.f32.mrf.mxu0
          %v1089 = vadd.f32 0.0, %v1088
          %v1090 = vpop.f32.mrf.mxu0
          %1091 = vdwg.mxu0
          %1092 = vrot.lane.b32.xlu0 %v780, 96
          %v1093 = vpop.permute.xlu0 %1092
          %v1094 = vsel %vm789, %v780, 0
          %v1096 = vsel %vm789, %v1093, 0
          %1098 = vmatprep.subr.mxu0 0.0
          %1099 = vmatpush1.xpose.msra.mxu0 0.0
          %1100 = vmatprep.subr.mxu0 0.0
          %1101 = vmatpush1.xpose.msra.mxu0 0.0
          %1102 = vmatprep.subr.mxu0 0.0
          %1103 = vmatpush1.xpose.msra.mxu0 0.0
          %1104 = vmatprep.subr.mxu0 0.0
          %1105 = vmatpush1.xpose.msra.mxu0 0.0
          %1106 = vmatprep.subr.mxu0 0.0
          %1107 = vmatpush1.xpose.msra.mxu0 0.0
          %1108 = vmatprep.subr.mxu0 0.0
          %1109 = vmatpush1.xpose.msra.mxu0 0.0
          %1110 = vmatprep.subr.mxu0 0.0
          %1111 = vmatpush1.xpose.msra.mxu0 0.0
          %1112 = vmatprep.subr.mxu0 0.0
          %1113 = vmatpush1.xpose.msra.mxu0 0.0
          %1114 = vmatprep.subr.mxu0 0.0
          %1115 = vmatpush1.xpose.msra.mxu0 0.0
          %1116 = vmatprep.subr.mxu0 0.0
          %1117 = vmatpush1.xpose.msra.mxu0 0.0
          %1118 = vmatprep.subr.mxu0 0.0
          %1119 = vmatpush1.xpose.msra.mxu0 0.0
          %1120 = vmatprep.subr.mxu0 0.0
          %1121 = vmatpush1.xpose.msra.mxu0 0.0
          %1122 = vmatprep.subr.mxu0 0.0
          %1123 = vmatpush1.xpose.msra.mxu0 0.0
          %1124 = vmatprep.subr.mxu0 0.0
          %1125 = vmatpush1.xpose.msra.mxu0 0.0
          %1126 = vmatprep.subr.mxu0 0.0
          %1127 = vmatpush1.xpose.msra.mxu0 0.0
          %1128 = vmatprep.subr.mxu0 0.0
          %1129 = vmatpush1.xpose.msra.mxu0 %v1096
          %1130 = vmatprep.subr.mxu0 0.0
          %1131 = vmatpush2.xpose.msra.mxu0 0.0
          %1132 = vmatprep.subr.mxu0 0.0
          %1133 = vmatpush2.xpose.msra.mxu0 0.0
          %1134 = vmatprep.subr.mxu0 0.0
          %1135 = vmatpush2.xpose.msra.mxu0 0.0
          %1136 = vmatprep.subr.mxu0 0.0
          %1137 = vmatpush2.xpose.msra.mxu0 0.0
          %1138 = vmatprep.subr.mxu0 0.0
          %1139 = vmatpush2.xpose.msra.mxu0 0.0
          %1140 = vmatprep.subr.mxu0 0.0
          %1141 = vmatpush2.xpose.msra.mxu0 0.0
          %1142 = vmatprep.subr.mxu0 0.0
          %1143 = vmatpush2.xpose.msra.mxu0 0.0
          %1144 = vmatprep.subr.mxu0 0.0
          %1145 = vmatpush2.xpose.msra.mxu0 0.0
          %1146 = vmatprep.subr.mxu0 0.0
          %1147 = vmatpush2.xpose.msra.mxu0 0.0
          %1148 = vmatprep.subr.mxu0 0.0
          %1149 = vmatpush2.xpose.msra.mxu0 0.0
          %1150 = vmatprep.subr.mxu0 0.0
          %1151 = vmatpush2.xpose.msra.mxu0 0.0
          %1152 = vmatprep.subr.mxu0 0.0
          %1153 = vmatpush2.xpose.msra.mxu0 0.0
          %1154 = vmatprep.subr.mxu0 0.0
          %1155 = vmatpush2.xpose.msra.mxu0 0.0
          %1156 = vmatprep.subr.mxu0 0.0
          %1157 = vmatpush2.xpose.msra.mxu0 0.0
          %1158 = vmatprep.subr.mxu0 0.0
          %1159 = vmatpush2.xpose.msra.mxu0 0.0
          %1160 = vmatprep.subr.mxu0 0.0
          %1161 = vmatpush2.xpose.msra.mxu0 0.0
          %1162 = vmatprep.mubr.f32.mxu0 0.0
          %1163 = vmatmul.mubr.f32.gmra.mxu0 %v1094
          %v1164 = vpop.f32.mrf.mxu0
          %v1165 = vadd.f32 0.0, %v1164
          %v1166 = vpop.f32.mrf.mxu0
          %1167 = vdwg.mxu0
          %1168 = vrot.lane.b32.xlu0 %v782, 96
          %v1169 = vpop.permute.xlu0 %1168
          %v1170 = vsel %vm789, %v782, 0
          %v1172 = vsel %vm789, %v1169, 0
          %1174 = vmatprep.subr.mxu0 0.0
          %1175 = vmatpush1.xpose.msra.mxu0 0.0
          %1176 = vmatprep.subr.mxu0 0.0
          %1177 = vmatpush1.xpose.msra.mxu0 0.0
          %1178 = vmatprep.subr.mxu0 0.0
          %1179 = vmatpush1.xpose.msra.mxu0 0.0
          %1180 = vmatprep.subr.mxu0 0.0
          %1181 = vmatpush1.xpose.msra.mxu0 0.0
          %1182 = vmatprep.subr.mxu0 0.0
          %1183 = vmatpush1.xpose.msra.mxu0 0.0
          %1184 = vmatprep.subr.mxu0 0.0
          %1185 = vmatpush1.xpose.msra.mxu0 0.0
          %1186 = vmatprep.subr.mxu0 0.0
          %1187 = vmatpush1.xpose.msra.mxu0 0.0
          %1188 = vmatprep.subr.mxu0 0.0
          %1189 = vmatpush1.xpose.msra.mxu0 0.0
          %1190 = vmatprep.subr.mxu0 0.0
          %1191 = vmatpush1.xpose.msra.mxu0 0.0
          %1192 = vmatprep.subr.mxu0 0.0
          %1193 = vmatpush1.xpose.msra.mxu0 0.0
          %1194 = vmatprep.subr.mxu0 0.0
          %1195 = vmatpush1.xpose.msra.mxu0 0.0
          %1196 = vmatprep.subr.mxu0 0.0
          %1197 = vmatpush1.xpose.msra.mxu0 0.0
          %1198 = vmatprep.subr.mxu0 0.0
          %1199 = vmatpush1.xpose.msra.mxu0 0.0
          %1200 = vmatprep.subr.mxu0 0.0
          %1201 = vmatpush1.xpose.msra.mxu0 0.0
          %1202 = vmatprep.subr.mxu0 0.0
          %1203 = vmatpush1.xpose.msra.mxu0 0.0
          %1204 = vmatprep.subr.mxu0 0.0
          %1205 = vmatpush1.xpose.msra.mxu0 %v1172
          %1206 = vmatprep.subr.mxu0 0.0
          %1207 = vmatpush2.xpose.msra.mxu0 0.0
          %1208 = vmatprep.subr.mxu0 0.0
          %1209 = vmatpush2.xpose.msra.mxu0 0.0
          %1210 = vmatprep.subr.mxu0 0.0
          %1211 = vmatpush2.xpose.msra.mxu0 0.0
          %1212 = vmatprep.subr.mxu0 0.0
          %1213 = vmatpush2.xpose.msra.mxu0 0.0
          %1214 = vmatprep.subr.mxu0 0.0
          %1215 = vmatpush2.xpose.msra.mxu0 0.0
          %1216 = vmatprep.subr.mxu0 0.0
          %1217 = vmatpush2.xpose.msra.mxu0 0.0
          %1218 = vmatprep.subr.mxu0 0.0
          %1219 = vmatpush2.xpose.msra.mxu0 0.0
          %1220 = vmatprep.subr.mxu0 0.0
          %1221 = vmatpush2.xpose.msra.mxu0 0.0
          %1222 = vmatprep.subr.mxu0 0.0
          %1223 = vmatpush2.xpose.msra.mxu0 0.0
          %1224 = vmatprep.subr.mxu0 0.0
          %1225 = vmatpush2.xpose.msra.mxu0 0.0
          %1226 = vmatprep.subr.mxu0 0.0
          %1227 = vmatpush2.xpose.msra.mxu0 0.0
          %1228 = vmatprep.subr.mxu0 0.0
          %1229 = vmatpush2.xpose.msra.mxu0 0.0
          %1230 = vmatprep.subr.mxu0 0.0
          %1231 = vmatpush2.xpose.msra.mxu0 0.0
          %1232 = vmatprep.subr.mxu0 0.0
          %1233 = vmatpush2.xpose.msra.mxu0 0.0
          %1234 = vmatprep.subr.mxu0 0.0
          %1235 = vmatpush2.xpose.msra.mxu0 0.0
          %1236 = vmatprep.subr.mxu0 0.0
          %1237 = vmatpush2.xpose.msra.mxu0 0.0
          %1238 = vmatprep.mubr.f32.mxu0 0.0
          %1239 = vmatmul.mubr.f32.gmra.mxu0 %v1170
          %v1240 = vpop.f32.mrf.mxu0
          %v1241 = vadd.f32 0.0, %v1240
          %v1242 = vpop.f32.mrf.mxu0
          %1243 = vdwg.mxu0
          %1244 = vrot.lane.b32.xlu0 %v784, 96
          %v1245 = vpop.permute.xlu0 %1244
          %v1246 = vsel %vm789, %v784, 0
          %v1248 = vsel %vm789, %v1245, 0
          %1250 = vmatprep.subr.mxu0 0.0
          %1251 = vmatpush1.xpose.msra.mxu0 0.0
          %1252 = vmatprep.subr.mxu0 0.0
          %1253 = vmatpush1.xpose.msra.mxu0 0.0
          %1254 = vmatprep.subr.mxu0 0.0
          %1255 = vmatpush1.xpose.msra.mxu0 0.0
          %1256 = vmatprep.subr.mxu0 0.0
          %1257 = vmatpush1.xpose.msra.mxu0 0.0
          %1258 = vmatprep.subr.mxu0 0.0
          %1259 = vmatpush1.xpose.msra.mxu0 0.0
          %1260 = vmatprep.subr.mxu0 0.0
          %1261 = vmatpush1.xpose.msra.mxu0 0.0
          %1262 = vmatprep.subr.mxu0 0.0
          %1263 = vmatpush1.xpose.msra.mxu0 0.0
          %1264 = vmatprep.subr.mxu0 0.0
          %1265 = vmatpush1.xpose.msra.mxu0 0.0
          %1266 = vmatprep.subr.mxu0 0.0
          %1267 = vmatpush1.xpose.msra.mxu0 0.0
          %1268 = vmatprep.subr.mxu0 0.0
          %1269 = vmatpush1.xpose.msra.mxu0 0.0
          %1270 = vmatprep.subr.mxu0 0.0
          %1271 = vmatpush1.xpose.msra.mxu0 0.0
          %1272 = vmatprep.subr.mxu0 0.0
          %1273 = vmatpush1.xpose.msra.mxu0 0.0
          %1274 = vmatprep.subr.mxu0 0.0
          %1275 = vmatpush1.xpose.msra.mxu0 0.0
          %1276 = vmatprep.subr.mxu0 0.0
          %1277 = vmatpush1.xpose.msra.mxu0 0.0
          %1278 = vmatprep.subr.mxu0 0.0
          %1279 = vmatpush1.xpose.msra.mxu0 0.0
          %1280 = vmatprep.subr.mxu0 0.0
          %1281 = vmatpush1.xpose.msra.mxu0 %v1248
          %1282 = vmatprep.subr.mxu0 0.0
          %1283 = vmatpush2.xpose.msra.mxu0 0.0
          %1284 = vmatprep.subr.mxu0 0.0
          %1285 = vmatpush2.xpose.msra.mxu0 0.0
          %1286 = vmatprep.subr.mxu0 0.0
          %1287 = vmatpush2.xpose.msra.mxu0 0.0
          %1288 = vmatprep.subr.mxu0 0.0
          %1289 = vmatpush2.xpose.msra.mxu0 0.0
          %1290 = vmatprep.subr.mxu0 0.0
          %1291 = vmatpush2.xpose.msra.mxu0 0.0
          %1292 = vmatprep.subr.mxu0 0.0
          %1293 = vmatpush2.xpose.msra.mxu0 0.0
          %1294 = vmatprep.subr.mxu0 0.0
          %1295 = vmatpush2.xpose.msra.mxu0 0.0
          %1296 = vmatprep.subr.mxu0 0.0
          %1297 = vmatpush2.xpose.msra.mxu0 0.0
          %1298 = vmatprep.subr.mxu0 0.0
          %1299 = vmatpush2.xpose.msra.mxu0 0.0
          %1300 = vmatprep.subr.mxu0 0.0
          %1301 = vmatpush2.xpose.msra.mxu0 0.0
          %1302 = vmatprep.subr.mxu0 0.0
          %1303 = vmatpush2.xpose.msra.mxu0 0.0
          %1304 = vmatprep.subr.mxu0 0.0
          %1305 = vmatpush2.xpose.msra.mxu0 0.0
          %1306 = vmatprep.subr.mxu0 0.0
          %1307 = vmatpush2.xpose.msra.mxu0 0.0
          %1308 = vmatprep.subr.mxu0 0.0
          %1309 = vmatpush2.xpose.msra.mxu0 0.0
          %1310 = vmatprep.subr.mxu0 0.0
          %1311 = vmatpush2.xpose.msra.mxu0 0.0
          %1312 = vmatprep.subr.mxu0 0.0
          %1313 = vmatpush2.xpose.msra.mxu0 0.0
          %1314 = vmatprep.mubr.f32.mxu0 0.0
          %1315 = vmatmul.mubr.f32.gmra.mxu0 %v1246
          %v1316 = vpop.f32.mrf.mxu0
          %v1317 = vadd.f32 0.0, %v1316
          %v1318 = vpop.f32.mrf.mxu0
          %1319 = vdwg.mxu0
          %1320 = vrot.lane.b32.xlu0 %v786, 96
          %v1321 = vpop.permute.xlu0 %1320
          %v1322 = vsel %vm789, %v786, 0
          %v1324 = vsel %vm789, %v1321, 0
          %1326 = vmatprep.subr.mxu0 0.0
          %1327 = vmatpush1.xpose.msra.mxu0 0.0
          %1328 = vmatprep.subr.mxu0 0.0
          %1329 = vmatpush1.xpose.msra.mxu0 0.0
          %1330 = vmatprep.subr.mxu0 0.0
          %1331 = vmatpush1.xpose.msra.mxu0 0.0
          %1332 = vmatprep.subr.mxu0 0.0
          %1333 = vmatpush1.xpose.msra.mxu0 0.0
          %1334 = vmatprep.subr.mxu0 0.0
          %1335 = vmatpush1.xpose.msra.mxu0 0.0
          %1336 = vmatprep.subr.mxu0 0.0
          %1337 = vmatpush1.xpose.msra.mxu0 0.0
          %1338 = vmatprep.subr.mxu0 0.0
          %1339 = vmatpush1.xpose.msra.mxu0 0.0
          %1340 = vmatprep.subr.mxu0 0.0
          %1341 = vmatpush1.xpose.msra.mxu0 0.0
          %1342 = vmatprep.subr.mxu0 0.0
          %1343 = vmatpush1.xpose.msra.mxu0 0.0
          %1344 = vmatprep.subr.mxu0 0.0
          %1345 = vmatpush1.xpose.msra.mxu0 0.0
          %1346 = vmatprep.subr.mxu0 0.0
          %1347 = vmatpush1.xpose.msra.mxu0 0.0
          %1348 = vmatprep.subr.mxu0 0.0
          %1349 = vmatpush1.xpose.msra.mxu0 0.0
          %1350 = vmatprep.subr.mxu0 0.0
          %1351 = vmatpush1.xpose.msra.mxu0 0.0
          %1352 = vmatprep.subr.mxu0 0.0
          %1353 = vmatpush1.xpose.msra.mxu0 0.0
          %1354 = vmatprep.subr.mxu0 0.0
          %1355 = vmatpush1.xpose.msra.mxu0 0.0
          %1356 = vmatprep.subr.mxu0 0.0
          %1357 = vmatpush1.xpose.msra.mxu0 %v1324
          %1358 = vmatprep.subr.mxu0 0.0
          %1359 = vmatpush2.xpose.msra.mxu0 0.0
          %1360 = vmatprep.subr.mxu0 0.0
          %1361 = vmatpush2.xpose.msra.mxu0 0.0
          %1362 = vmatprep.subr.mxu0 0.0
          %1363 = vmatpush2.xpose.msra.mxu0 0.0
          %1364 = vmatprep.subr.mxu0 0.0
          %1365 = vmatpush2.xpose.msra.mxu0 0.0
          %1366 = vmatprep.subr.mxu0 0.0
          %1367 = vmatpush2.xpose.msra.mxu0 0.0
          %1368 = vmatprep.subr.mxu0 0.0
          %1369 = vmatpush2.xpose.msra.mxu0 0.0
          %1370 = vmatprep.subr.mxu0 0.0
          %1371 = vmatpush2.xpose.msra.mxu0 0.0
          %1372 = vmatprep.subr.mxu0 0.0
          %1373 = vmatpush2.xpose.msra.mxu0 0.0
          %1374 = vmatprep.subr.mxu0 0.0
          %1375 = vmatpush2.xpose.msra.mxu0 0.0
          %1376 = vmatprep.subr.mxu0 0.0
          %1377 = vmatpush2.xpose.msra.mxu0 0.0
          %1378 = vmatprep.subr.mxu0 0.0
          %1379 = vmatpush2.xpose.msra.mxu0 0.0
          %1380 = vmatprep.subr.mxu0 0.0
          %1381 = vmatpush2.xpose.msra.mxu0 0.0
          %1382 = vmatprep.subr.mxu0 0.0
          %1383 = vmatpush2.xpose.msra.mxu0 0.0
          %1384 = vmatprep.subr.mxu0 0.0
          %1385 = vmatpush2.xpose.msra.mxu0 0.0
          %1386 = vmatprep.subr.mxu0 0.0
          %1387 = vmatpush2.xpose.msra.mxu0 0.0
          %1388 = vmatprep.subr.mxu0 0.0
          %1389 = vmatpush2.xpose.msra.mxu0 0.0
          %1390 = vmatprep.mubr.f32.mxu0 0.0
          %1391 = vmatmul.mubr.f32.gmra.mxu0 %v1322
          %v1392 = vpop.f32.mrf.mxu0
          %v1393 = vadd.f32 0.0, %v1392
          %v1394 = vpop.f32.mrf.mxu0
          %1395 = vdwg.mxu0
          %v1396 = vsel %vm789, %v861, -inf
          %1397 = vmax.xlane.f32.xlu0 %v1396
          %v1398 = vpop.xlane.xlu0 %1397
          %v1399 = vsel %vm789, %v937, -inf
          %1400 = vmax.xlane.f32.xlu0 %v1399
          %v1401 = vpop.xlane.xlu0 %1400
          %v1402 = vsel %vm789, %v1013, -inf
          %1403 = vmax.xlane.f32.xlu0 %v1402
          %v1404 = vpop.xlane.xlu0 %1403
          %v1405 = vsel %vm789, %v1089, -inf
          %1406 = vmax.xlane.f32.xlu0 %v1405
          %v1407 = vpop.xlane.xlu0 %1406
          %v1408 = vsel %vm789, %v1165, -inf
          %1409 = vmax.xlane.f32.xlu0 %v1408
          %v1410 = vpop.xlane.xlu0 %1409
          %v1411 = vsel %vm789, %v1241, -inf
          %1412 = vmax.xlane.f32.xlu0 %v1411
          %v1413 = vpop.xlane.xlu0 %1412
          %v1414 = vsel %vm789, %v1317, -inf
          %1415 = vmax.xlane.f32.xlu0 %v1414
          %v1416 = vpop.xlane.xlu0 %1415
          %v1417 = vsel %vm789, %v1393, -inf
          %1418 = vmax.xlane.f32.xlu0 %v1417
          %v1419 = vpop.xlane.xlu0 %1418
          %v1420 = vsub.f32 %v861, %v1398
          %v1421 = vsub.f32 %v937, %v1401
          %v1422 = vsub.f32 %v1013, %v1404
          %v1423 = vsub.f32 %v1089, %v1407
          %v1424 = vsub.f32 %v1165, %v1410
          %v1425 = vsub.f32 %v1241, %v1413
          %v1426 = vsub.f32 %v1317, %v1416
          %v1427 = vsub.f32 %v1393, %v1419
          %v1428 = vmul.f32 %v1420, 1.442695
          %v1429 = vpow.pop %v1428
          %v1430 = vmul.f32 %v1421, 1.442695
          %v1431 = vpow.pop %v1430
          %v1432 = vmul.f32 %v1422, 1.442695
          %v1433 = vpow.pop %v1432
          %v1434 = vmul.f32 %v1423, 1.442695
          %v1435 = vpow.pop %v1434
          %v1436 = vmul.f32 %v1424, 1.442695
          %v1437 = vpow.pop %v1436
          %v1438 = vmul.f32 %v1425, 1.442695
          %v1439 = vpow.pop %v1438
          %v1440 = vmul.f32 %v1426, 1.442695
          %v1441 = vpow.pop %v1440
          %v1442 = vmul.f32 %v1427, 1.442695
          %v1443 = vpow.pop %v1442
          %v1444 = vsel %vm789, %v1429, 0.0
          %1445 = vadd.xlane.f32.xlu0 %v1444
          %v1446 = vpop.xlane.xlu0 %1445
          %v1447 = vsel %vm789, %v1431, 0.0
          %1448 = vadd.xlane.f32.xlu0 %v1447
          %v1449 = vpop.xlane.xlu0 %1448
          %v1450 = vsel %vm789, %v1433, 0.0
          %1451 = vadd.xlane.f32.xlu0 %v1450
          %v1452 = vpop.xlane.xlu0 %1451
          %v1453 = vsel %vm789, %v1435, 0.0
          %1454 = vadd.xlane.f32.xlu0 %v1453
          %v1455 = vpop.xlane.xlu0 %1454
          %v1456 = vsel %vm789, %v1437, 0.0
          %1457 = vadd.xlane.f32.xlu0 %v1456
          %v1458 = vpop.xlane.xlu0 %1457
          %v1459 = vsel %vm789, %v1439, 0.0
          %1460 = vadd.xlane.f32.xlu0 %v1459
          %v1461 = vpop.xlane.xlu0 %1460
          %v1462 = vsel %vm789, %v1441, 0.0
          %1463 = vadd.xlane.f32.xlu0 %v1462
          %v1464 = vpop.xlane.xlu0 %1463
          %v1465 = vsel %vm789, %v1443, 0.0
          %1466 = vadd.xlane.f32.xlu0 %v1465
          %v1467 = vpop.xlane.xlu0 %1466
          %v1468 = vrcp.pop %v1446
          %v1469 = vrcp.pop %v1449
          %v1470 = vrcp.pop %v1452
          %v1471 = vrcp.pop %v1455
          %v1472 = vrcp.pop %v1458
          %v1473 = vrcp.pop %v1461
          %v1474 = vrcp.pop %v1464
          %v1475 = vrcp.pop %v1467
          %v1476 = vmul.f32 %v1429, %v1468
          %v1477 = vmul.f32 %v1431, %v1469
          %v1478 = vmul.f32 %v1433, %v1470
          %v1479 = vmul.f32 %v1435, %v1471
          %v1480 = vmul.f32 %v1437, %v1472
          %v1481 = vmul.f32 %v1439, %v1473
          %v1482 = vmul.f32 %v1441, %v1474
          %v1483 = vmul.f32 %v1443, %v1475
          %1484 = vrot.lane.b32.xlu0 %v765, 64
          %v1485 = vpop.permute.xlu0 %1484
          %v1488 = vsel %vm789, %v1476, 0
          %1490 = vmatprep.subr.mxu0 0.0
          %1491 = vmatpush1.msra.mxu0 0.0
          %1492 = vmatprep.subr.mxu0 0.0
          %1493 = vmatpush1.msra.mxu0 0.0
          %1494 = vmatprep.subr.mxu0 0.0
          %1495 = vmatpush1.msra.mxu0 0.0
          %1496 = vmatprep.subr.mxu0 0.0
          %1497 = vmatpush1.msra.mxu0 0.0
          %1498 = vmatprep.subr.mxu0 0.0
          %1499 = vmatpush1.msra.mxu0 0.0
          %1500 = vmatprep.subr.mxu0 0.0
          %1501 = vmatpush1.msra.mxu0 0.0
          %1502 = vmatprep.subr.mxu0 0.0
          %1503 = vmatpush1.msra.mxu0 0.0
          %1504 = vmatprep.subr.mxu0 0.0
          %1505 = vmatpush1.msra.mxu0 0.0
          %1506 = vmatprep.subr.mxu0 0.0
          %1507 = vmatpush1.msra.mxu0 0.0
          %1508 = vmatprep.subr.mxu0 0.0
          %1509 = vmatpush1.msra.mxu0 0.0
          %1510 = vmatprep.subr.mxu0 0.0
          %1511 = vmatpush1.msra.mxu0 0.0
          %1512 = vmatprep.subr.mxu0 0.0
          %1513 = vmatpush1.msra.mxu0 0.0
          %1514 = vmatprep.subr.mxu0 0.0
          %1515 = vmatpush1.msra.mxu0 0.0
          %1516 = vmatprep.subr.mxu0 0.0
          %1517 = vmatpush1.msra.mxu0 0.0
          %1518 = vmatprep.subr.mxu0 0.0
          %1519 = vmatpush1.msra.mxu0 0.0
          %1520 = vmatprep.subr.mxu0 0.0
          %1521 = vmatpush1.msra.mxu0 %v1485
          %1522 = vmatprep.subr.mxu0 0.0
          %1523 = vmatpush2.msra.mxu0 0.0
          %1524 = vmatprep.subr.mxu0 0.0
          %1525 = vmatpush2.msra.mxu0 0.0
          %1526 = vmatprep.subr.mxu0 0.0
          %1527 = vmatpush2.msra.mxu0 0.0
          %1528 = vmatprep.subr.mxu0 0.0
          %1529 = vmatpush2.msra.mxu0 0.0
          %1530 = vmatprep.subr.mxu0 0.0
          %1531 = vmatpush2.msra.mxu0 0.0
          %1532 = vmatprep.subr.mxu0 0.0
          %1533 = vmatpush2.msra.mxu0 0.0
          %1534 = vmatprep.subr.mxu0 0.0
          %1535 = vmatpush2.msra.mxu0 0.0
          %1536 = vmatprep.subr.mxu0 0.0
          %1537 = vmatpush2.msra.mxu0 0.0
          %1538 = vmatprep.subr.mxu0 0.0
          %1539 = vmatpush2.msra.mxu0 0.0
          %1540 = vmatprep.subr.mxu0 0.0
          %1541 = vmatpush2.msra.mxu0 0.0
          %1542 = vmatprep.subr.mxu0 0.0
          %1543 = vmatpush2.msra.mxu0 0.0
          %1544 = vmatprep.subr.mxu0 0.0
          %1545 = vmatpush2.msra.mxu0 0.0
          %1546 = vmatprep.subr.mxu0 0.0
          %1547 = vmatpush2.msra.mxu0 0.0
          %1548 = vmatprep.subr.mxu0 0.0
          %1549 = vmatpush2.msra.mxu0 0.0
          %1550 = vmatprep.subr.mxu0 0.0
          %1551 = vmatpush2.msra.mxu0 0.0
          %1552 = vmatprep.subr.mxu0 0.0
          %1553 = vmatpush2.msra.mxu0 0.0
          %1554 = vmatprep.mubr.f32.mxu0 0.0
          %1555 = vmatmul.mubr.f32.gmra.mxu0 %v1488
          %v1556 = vpop.f32.mrf.mxu0
          %v1557 = vadd.f32 0.0, %v1556
          %v1558 = vpop.f32.mrf.mxu0
          %1559 = vdwg.mxu0
          %1560 = vrot.lane.b32.xlu0 %v770, 64
          %v1561 = vpop.permute.xlu0 %1560
          %v1564 = vsel %vm789, %v1477, 0
          %1566 = vmatprep.subr.mxu0 0.0
          %1567 = vmatpush1.msra.mxu0 0.0
          %1568 = vmatprep.subr.mxu0 0.0
          %1569 = vmatpush1.msra.mxu0 0.0
          %1570 = vmatprep.subr.mxu0 0.0
          %1571 = vmatpush1.msra.mxu0 0.0
          %1572 = vmatprep.subr.mxu0 0.0
          %1573 = vmatpush1.msra.mxu0 0.0
          %1574 = vmatprep.subr.mxu0 0.0
          %1575 = vmatpush1.msra.mxu0 0.0
          %1576 = vmatprep.subr.mxu0 0.0
          %1577 = vmatpush1.msra.mxu0 0.0
          %1578 = vmatprep.subr.mxu0 0.0
          %1579 = vmatpush1.msra.mxu0 0.0
          %1580 = vmatprep.subr.mxu0 0.0
          %1581 = vmatpush1.msra.mxu0 0.0
          %1582 = vmatprep.subr.mxu0 0.0
          %1583 = vmatpush1.msra.mxu0 0.0
          %1584 = vmatprep.subr.mxu0 0.0
          %1585 = vmatpush1.msra.mxu0 0.0
          %1586 = vmatprep.subr.mxu0 0.0
          %1587 = vmatpush1.msra.mxu0 0.0
          %1588 = vmatprep.subr.mxu0 0.0
          %1589 = vmatpush1.msra.mxu0 0.0
          %1590 = vmatprep.subr.mxu0 0.0
          %1591 = vmatpush1.msra.mxu0 0.0
          %1592 = vmatprep.subr.mxu0 0.0
          %1593 = vmatpush1.msra.mxu0 0.0
          %1594 = vmatprep.subr.mxu0 0.0
          %1595 = vmatpush1.msra.mxu0 0.0
          %1596 = vmatprep.subr.mxu0 0.0
          %1597 = vmatpush1.msra.mxu0 %v1561
          %1598 = vmatprep.subr.mxu0 0.0
          %1599 = vmatpush2.msra.mxu0 0.0
          %1600 = vmatprep.subr.mxu0 0.0
          %1601 = vmatpush2.msra.mxu0 0.0
          %1602 = vmatprep.subr.mxu0 0.0
          %1603 = vmatpush2.msra.mxu0 0.0
          %1604 = vmatprep.subr.mxu0 0.0
          %1605 = vmatpush2.msra.mxu0 0.0
          %1606 = vmatprep.subr.mxu0 0.0
          %1607 = vmatpush2.msra.mxu0 0.0
          %1608 = vmatprep.subr.mxu0 0.0
          %1609 = vmatpush2.msra.mxu0 0.0
          %1610 = vmatprep.subr.mxu0 0.0
          %1611 = vmatpush2.msra.mxu0 0.0
          %1612 = vmatprep.subr.mxu0 0.0
          %1613 = vmatpush2.msra.mxu0 0.0
          %1614 = vmatprep.subr.mxu0 0.0
          %1615 = vmatpush2.msra.mxu0 0.0
          %1616 = vmatprep.subr.mxu0 0.0
          %1617 = vmatpush2.msra.mxu0 0.0
          %1618 = vmatprep.subr.mxu0 0.0
          %1619 = vmatpush2.msra.mxu0 0.0
          %1620 = vmatprep.subr.mxu0 0.0
          %1621 = vmatpush2.msra.mxu0 0.0
          %1622 = vmatprep.subr.mxu0 0.0
          %1623 = vmatpush2.msra.mxu0 0.0
          %1624 = vmatprep.subr.mxu0 0.0
          %1625 = vmatpush2.msra.mxu0 0.0
          %1626 = vmatprep.subr.mxu0 0.0
          %1627 = vmatpush2.msra.mxu0 0.0
          %1628 = vmatprep.subr.mxu0 0.0
          %1629 = vmatpush2.msra.mxu0 0.0
          %1630 = vmatprep.mubr.f32.mxu0 0.0
          %1631 = vmatmul.mubr.f32.gmra.mxu0 %v1564
          %v1632 = vpop.f32.mrf.mxu0
          %v1633 = vadd.f32 0.0, %v1632
          %v1634 = vpop.f32.mrf.mxu0
          %1635 = vdwg.mxu0
          %1636 = vrot.lane.b32.xlu0 %v776, 64
          %v1637 = vpop.permute.xlu0 %1636
          %v1640 = vsel %vm789, %v1478, 0
          %1642 = vmatprep.subr.mxu0 0.0
          %1643 = vmatpush1.msra.mxu0 0.0
          %1644 = vmatprep.subr.mxu0 0.0
          %1645 = vmatpush1.msra.mxu0 0.0
          %1646 = vmatprep.subr.mxu0 0.0
          %1647 = vmatpush1.msra.mxu0 0.0
          %1648 = vmatprep.subr.mxu0 0.0
          %1649 = vmatpush1.msra.mxu0 0.0
          %1650 = vmatprep.subr.mxu0 0.0
          %1651 = vmatpush1.msra.mxu0 0.0
          %1652 = vmatprep.subr.mxu0 0.0
          %1653 = vmatpush1.msra.mxu0 0.0
          %1654 = vmatprep.subr.mxu0 0.0
          %1655 = vmatpush1.msra.mxu0 0.0
          %1656 = vmatprep.subr.mxu0 0.0
          %1657 = vmatpush1.msra.mxu0 0.0
          %1658 = vmatprep.subr.mxu0 0.0
          %1659 = vmatpush1.msra.mxu0 0.0
          %1660 = vmatprep.subr.mxu0 0.0
          %1661 = vmatpush1.msra.mxu0 0.0
          %1662 = vmatprep.subr.mxu0 0.0
          %1663 = vmatpush1.msra.mxu0 0.0
          %1664 = vmatprep.subr.mxu0 0.0
          %1665 = vmatpush1.msra.mxu0 0.0
          %1666 = vmatprep.subr.mxu0 0.0
          %1667 = vmatpush1.msra.mxu0 0.0
          %1668 = vmatprep.subr.mxu0 0.0
          %1669 = vmatpush1.msra.mxu0 0.0
          %1670 = vmatprep.subr.mxu0 0.0
          %1671 = vmatpush1.msra.mxu0 0.0
          %1672 = vmatprep.subr.mxu0 0.0
          %1673 = vmatpush1.msra.mxu0 %v1637
          %1674 = vmatprep.subr.mxu0 0.0
          %1675 = vmatpush2.msra.mxu0 0.0
          %1676 = vmatprep.subr.mxu0 0.0
          %1677 = vmatpush2.msra.mxu0 0.0
          %1678 = vmatprep.subr.mxu0 0.0
          %1679 = vmatpush2.msra.mxu0 0.0
          %1680 = vmatprep.subr.mxu0 0.0
          %1681 = vmatpush2.msra.mxu0 0.0
          %1682 = vmatprep.subr.mxu0 0.0
          %1683 = vmatpush2.msra.mxu0 0.0
          %1684 = vmatprep.subr.mxu0 0.0
          %1685 = vmatpush2.msra.mxu0 0.0
          %1686 = vmatprep.subr.mxu0 0.0
          %1687 = vmatpush2.msra.mxu0 0.0
          %1688 = vmatprep.subr.mxu0 0.0
          %1689 = vmatpush2.msra.mxu0 0.0
          %1690 = vmatprep.subr.mxu0 0.0
          %1691 = vmatpush2.msra.mxu0 0.0
          %1692 = vmatprep.subr.mxu0 0.0
          %1693 = vmatpush2.msra.mxu0 0.0
          %1694 = vmatprep.subr.mxu0 0.0
          %1695 = vmatpush2.msra.mxu0 0.0
          %1696 = vmatprep.subr.mxu0 0.0
          %1697 = vmatpush2.msra.mxu0 0.0
          %1698 = vmatprep.subr.mxu0 0.0
          %1699 = vmatpush2.msra.mxu0 0.0
          %1700 = vmatprep.subr.mxu0 0.0
          %1701 = vmatpush2.msra.mxu0 0.0
          %1702 = vmatprep.subr.mxu0 0.0
          %1703 = vmatpush2.msra.mxu0 0.0
          %1704 = vmatprep.subr.mxu0 0.0
          %1705 = vmatpush2.msra.mxu0 0.0
          %1706 = vmatprep.mubr.f32.mxu0 0.0
          %1707 = vmatmul.mubr.f32.gmra.mxu0 %v1640
          %v1708 = vpop.f32.mrf.mxu0
          %v1709 = vadd.f32 0.0, %v1708
          %v1710 = vpop.f32.mrf.mxu0
          %1711 = vdwg.mxu0
          %1712 = vrot.lane.b32.xlu0 %v778, 64
          %v1713 = vpop.permute.xlu0 %1712
          %v1716 = vsel %vm789, %v1479, 0
          %1718 = vmatprep.subr.mxu0 0.0
          %1719 = vmatpush1.msra.mxu0 0.0
          %1720 = vmatprep.subr.mxu0 0.0
          %1721 = vmatpush1.msra.mxu0 0.0
          %1722 = vmatprep.subr.mxu0 0.0
          %1723 = vmatpush1.msra.mxu0 0.0
          %1724 = vmatprep.subr.mxu0 0.0
          %1725 = vmatpush1.msra.mxu0 0.0
          %1726 = vmatprep.subr.mxu0 0.0
          %1727 = vmatpush1.msra.mxu0 0.0
          %1728 = vmatprep.subr.mxu0 0.0
          %1729 = vmatpush1.msra.mxu0 0.0
          %1730 = vmatprep.subr.mxu0 0.0
          %1731 = vmatpush1.msra.mxu0 0.0
          %1732 = vmatprep.subr.mxu0 0.0
          %1733 = vmatpush1.msra.mxu0 0.0
          %1734 = vmatprep.subr.mxu0 0.0
          %1735 = vmatpush1.msra.mxu0 0.0
          %1736 = vmatprep.subr.mxu0 0.0
          %1737 = vmatpush1.msra.mxu0 0.0
          %1738 = vmatprep.subr.mxu0 0.0
          %1739 = vmatpush1.msra.mxu0 0.0
          %1740 = vmatprep.subr.mxu0 0.0
          %1741 = vmatpush1.msra.mxu0 0.0
          %1742 = vmatprep.subr.mxu0 0.0
          %1743 = vmatpush1.msra.mxu0 0.0
          %1744 = vmatprep.subr.mxu0 0.0
          %1745 = vmatpush1.msra.mxu0 0.0
          %1746 = vmatprep.subr.mxu0 0.0
          %1747 = vmatpush1.msra.mxu0 0.0
          %1748 = vmatprep.subr.mxu0 0.0
          %1749 = vmatpush1.msra.mxu0 %v1713
          %1750 = vmatprep.subr.mxu0 0.0
          %1751 = vmatpush2.msra.mxu0 0.0
          %1752 = vmatprep.subr.mxu0 0.0
          %1753 = vmatpush2.msra.mxu0 0.0
          %1754 = vmatprep.subr.mxu0 0.0
          %1755 = vmatpush2.msra.mxu0 0.0
          %1756 = vmatprep.subr.mxu0 0.0
          %1757 = vmatpush2.msra.mxu0 0.0
          %1758 = vmatprep.subr.mxu0 0.0
          %1759 = vmatpush2.msra.mxu0 0.0
          %1760 = vmatprep.subr.mxu0 0.0
          %1761 = vmatpush2.msra.mxu0 0.0
          %1762 = vmatprep.subr.mxu0 0.0
          %1763 = vmatpush2.msra.mxu0 0.0
          %1764 = vmatprep.subr.mxu0 0.0
          %1765 = vmatpush2.msra.mxu0 0.0
          %1766 = vmatprep.subr.mxu0 0.0
          %1767 = vmatpush2.msra.mxu0 0.0
          %1768 = vmatprep.subr.mxu0 0.0
          %1769 = vmatpush2.msra.mxu0 0.0
          %1770 = vmatprep.subr.mxu0 0.0
          %1771 = vmatpush2.msra.mxu0 0.0
          %1772 = vmatprep.subr.mxu0 0.0
          %1773 = vmatpush2.msra.mxu0 0.0
          %1774 = vmatprep.subr.mxu0 0.0
          %1775 = vmatpush2.msra.mxu0 0.0
          %1776 = vmatprep.subr.mxu0 0.0
          %1777 = vmatpush2.msra.mxu0 0.0
          %1778 = vmatprep.subr.mxu0 0.0
          %1779 = vmatpush2.msra.mxu0 0.0
          %1780 = vmatprep.subr.mxu0 0.0
          %1781 = vmatpush2.msra.mxu0 0.0
          %1782 = vmatprep.mubr.f32.mxu0 0.0
          %1783 = vmatmul.mubr.f32.gmra.mxu0 %v1716
          %v1784 = vpop.f32.mrf.mxu0
          %v1785 = vadd.f32 0.0, %v1784
          %v1786 = vpop.f32.mrf.mxu0
          %1787 = vdwg.mxu0
          %1788 = vrot.lane.b32.xlu0 %v780, 64
          %v1789 = vpop.permute.xlu0 %1788
          %v1792 = vsel %vm789, %v1480, 0
          %1794 = vmatprep.subr.mxu0 0.0
          %1795 = vmatpush1.msra.mxu0 0.0
          %1796 = vmatprep.subr.mxu0 0.0
          %1797 = vmatpush1.msra.mxu0 0.0
          %1798 = vmatprep.subr.mxu0 0.0
          %1799 = vmatpush1.msra.mxu0 0.0
          %1800 = vmatprep.subr.mxu0 0.0
          %1801 = vmatpush1.msra.mxu0 0.0
          %1802 = vmatprep.subr.mxu0 0.0
          %1803 = vmatpush1.msra.mxu0 0.0
          %1804 = vmatprep.subr.mxu0 0.0
          %1805 = vmatpush1.msra.mxu0 0.0
          %1806 = vmatprep.subr.mxu0 0.0
          %1807 = vmatpush1.msra.mxu0 0.0
          %1808 = vmatprep.subr.mxu0 0.0
          %1809 = vmatpush1.msra.mxu0 0.0
          %1810 = vmatprep.subr.mxu0 0.0
          %1811 = vmatpush1.msra.mxu0 0.0
          %1812 = vmatprep.subr.mxu0 0.0
          %1813 = vmatpush1.msra.mxu0 0.0
          %1814 = vmatprep.subr.mxu0 0.0
          %1815 = vmatpush1.msra.mxu0 0.0
          %1816 = vmatprep.subr.mxu0 0.0
          %1817 = vmatpush1.msra.mxu0 0.0
          %1818 = vmatprep.subr.mxu0 0.0
          %1819 = vmatpush1.msra.mxu0 0.0
          %1820 = vmatprep.subr.mxu0 0.0
          %1821 = vmatpush1.msra.mxu0 0.0
          %1822 = vmatprep.subr.mxu0 0.0
          %1823 = vmatpush1.msra.mxu0 0.0
          %1824 = vmatprep.subr.mxu0 0.0
          %1825 = vmatpush1.msra.mxu0 %v1789
          %1826 = vmatprep.subr.mxu0 0.0
          %1827 = vmatpush2.msra.mxu0 0.0
          %1828 = vmatprep.subr.mxu0 0.0
          %1829 = vmatpush2.msra.mxu0 0.0
          %1830 = vmatprep.subr.mxu0 0.0
          %1831 = vmatpush2.msra.mxu0 0.0
          %1832 = vmatprep.subr.mxu0 0.0
          %1833 = vmatpush2.msra.mxu0 0.0
          %1834 = vmatprep.subr.mxu0 0.0
          %1835 = vmatpush2.msra.mxu0 0.0
          %1836 = vmatprep.subr.mxu0 0.0
          %1837 = vmatpush2.msra.mxu0 0.0
          %1838 = vmatprep.subr.mxu0 0.0
          %1839 = vmatpush2.msra.mxu0 0.0
          %1840 = vmatprep.subr.mxu0 0.0
          %1841 = vmatpush2.msra.mxu0 0.0
          %1842 = vmatprep.subr.mxu0 0.0
          %1843 = vmatpush2.msra.mxu0 0.0
          %1844 = vmatprep.subr.mxu0 0.0
          %1845 = vmatpush2.msra.mxu0 0.0
          %1846 = vmatprep.subr.mxu0 0.0
          %1847 = vmatpush2.msra.mxu0 0.0
          %1848 = vmatprep.subr.mxu0 0.0
          %1849 = vmatpush2.msra.mxu0 0.0
          %1850 = vmatprep.subr.mxu0 0.0
          %1851 = vmatpush2.msra.mxu0 0.0
          %1852 = vmatprep.subr.mxu0 0.0
          %1853 = vmatpush2.msra.mxu0 0.0
          %1854 = vmatprep.subr.mxu0 0.0
          %1855 = vmatpush2.msra.mxu0 0.0
          %1856 = vmatprep.subr.mxu0 0.0
          %1857 = vmatpush2.msra.mxu0 0.0
          %1858 = vmatprep.mubr.f32.mxu0 0.0
          %1859 = vmatmul.mubr.f32.gmra.mxu0 %v1792
          %v1860 = vpop.f32.mrf.mxu0
          %v1861 = vadd.f32 0.0, %v1860
          %v1862 = vpop.f32.mrf.mxu0
          %1863 = vdwg.mxu0
          %1864 = vrot.lane.b32.xlu0 %v782, 64
          %v1865 = vpop.permute.xlu0 %1864
          %v1868 = vsel %vm789, %v1481, 0
          %1870 = vmatprep.subr.mxu0 0.0
          %1871 = vmatpush1.msra.mxu0 0.0
          %1872 = vmatprep.subr.mxu0 0.0
          %1873 = vmatpush1.msra.mxu0 0.0
          %1874 = vmatprep.subr.mxu0 0.0
          %1875 = vmatpush1.msra.mxu0 0.0
          %1876 = vmatprep.subr.mxu0 0.0
          %1877 = vmatpush1.msra.mxu0 0.0
          %1878 = vmatprep.subr.mxu0 0.0
          %1879 = vmatpush1.msra.mxu0 0.0
          %1880 = vmatprep.subr.mxu0 0.0
          %1881 = vmatpush1.msra.mxu0 0.0
          %1882 = vmatprep.subr.mxu0 0.0
          %1883 = vmatpush1.msra.mxu0 0.0
          %1884 = vmatprep.subr.mxu0 0.0
          %1885 = vmatpush1.msra.mxu0 0.0
          %1886 = vmatprep.subr.mxu0 0.0
          %1887 = vmatpush1.msra.mxu0 0.0
          %1888 = vmatprep.subr.mxu0 0.0
          %1889 = vmatpush1.msra.mxu0 0.0
          %1890 = vmatprep.subr.mxu0 0.0
          %1891 = vmatpush1.msra.mxu0 0.0
          %1892 = vmatprep.subr.mxu0 0.0
          %1893 = vmatpush1.msra.mxu0 0.0
          %1894 = vmatprep.subr.mxu0 0.0
          %1895 = vmatpush1.msra.mxu0 0.0
          %1896 = vmatprep.subr.mxu0 0.0
          %1897 = vmatpush1.msra.mxu0 0.0
          %1898 = vmatprep.subr.mxu0 0.0
          %1899 = vmatpush1.msra.mxu0 0.0
          %1900 = vmatprep.subr.mxu0 0.0
          %1901 = vmatpush1.msra.mxu0 %v1865
          %1902 = vmatprep.subr.mxu0 0.0
          %1903 = vmatpush2.msra.mxu0 0.0
          %1904 = vmatprep.subr.mxu0 0.0
          %1905 = vmatpush2.msra.mxu0 0.0
          %1906 = vmatprep.subr.mxu0 0.0
          %1907 = vmatpush2.msra.mxu0 0.0
          %1908 = vmatprep.subr.mxu0 0.0
          %1909 = vmatpush2.msra.mxu0 0.0
          %1910 = vmatprep.subr.mxu0 0.0
          %1911 = vmatpush2.msra.mxu0 0.0
          %1912 = vmatprep.subr.mxu0 0.0
          %1913 = vmatpush2.msra.mxu0 0.0
          %1914 = vmatprep.subr.mxu0 0.0
          %1915 = vmatpush2.msra.mxu0 0.0
          %1916 = vmatprep.subr.mxu0 0.0
          %1917 = vmatpush2.msra.mxu0 0.0
          %1918 = vmatprep.subr.mxu0 0.0
          %1919 = vmatpush2.msra.mxu0 0.0
          %1920 = vmatprep.subr.mxu0 0.0
          %1921 = vmatpush2.msra.mxu0 0.0
          %1922 = vmatprep.subr.mxu0 0.0
          %1923 = vmatpush2.msra.mxu0 0.0
          %1924 = vmatprep.subr.mxu0 0.0
          %1925 = vmatpush2.msra.mxu0 0.0
          %1926 = vmatprep.subr.mxu0 0.0
          %1927 = vmatpush2.msra.mxu0 0.0
          %1928 = vmatprep.subr.mxu0 0.0
          %1929 = vmatpush2.msra.mxu0 0.0
          %1930 = vmatprep.subr.mxu0 0.0
          %1931 = vmatpush2.msra.mxu0 0.0
          %1932 = vmatprep.subr.mxu0 0.0
          %1933 = vmatpush2.msra.mxu0 0.0
          %1934 = vmatprep.mubr.f32.mxu0 0.0
          %1935 = vmatmul.mubr.f32.gmra.mxu0 %v1868
          %v1936 = vpop.f32.mrf.mxu0
          %v1937 = vadd.f32 0.0, %v1936
          %v1938 = vpop.f32.mrf.mxu0
          %1939 = vdwg.mxu0
          %1940 = vrot.lane.b32.xlu0 %v784, 64
          %v1941 = vpop.permute.xlu0 %1940
          %v1944 = vsel %vm789, %v1482, 0
          %1946 = vmatprep.subr.mxu0 0.0
          %1947 = vmatpush1.msra.mxu0 0.0
          %1948 = vmatprep.subr.mxu0 0.0
          %1949 = vmatpush1.msra.mxu0 0.0
          %1950 = vmatprep.subr.mxu0 0.0
          %1951 = vmatpush1.msra.mxu0 0.0
          %1952 = vmatprep.subr.mxu0 0.0
          %1953 = vmatpush1.msra.mxu0 0.0
          %1954 = vmatprep.subr.mxu0 0.0
          %1955 = vmatpush1.msra.mxu0 0.0
          %1956 = vmatprep.subr.mxu0 0.0
          %1957 = vmatpush1.msra.mxu0 0.0
          %1958 = vmatprep.subr.mxu0 0.0
          %1959 = vmatpush1.msra.mxu0 0.0
          %1960 = vmatprep.subr.mxu0 0.0
          %1961 = vmatpush1.msra.mxu0 0.0
          %1962 = vmatprep.subr.mxu0 0.0
          %1963 = vmatpush1.msra.mxu0 0.0
          %1964 = vmatprep.subr.mxu0 0.0
          %1965 = vmatpush1.msra.mxu0 0.0
          %1966 = vmatprep.subr.mxu0 0.0
          %1967 = vmatpush1.msra.mxu0 0.0
          %1968 = vmatprep.subr.mxu0 0.0
          %1969 = vmatpush1.msra.mxu0 0.0
          %1970 = vmatprep.subr.mxu0 0.0
          %1971 = vmatpush1.msra.mxu0 0.0
          %1972 = vmatprep.subr.mxu0 0.0
          %1973 = vmatpush1.msra.mxu0 0.0
          %1974 = vmatprep.subr.mxu0 0.0
          %1975 = vmatpush1.msra.mxu0 0.0
          %1976 = vmatprep.subr.mxu0 0.0
          %1977 = vmatpush1.msra.mxu0 %v1941
          %1978 = vmatprep.subr.mxu0 0.0
          %1979 = vmatpush2.msra.mxu0 0.0
          %1980 = vmatprep.subr.mxu0 0.0
          %1981 = vmatpush2.msra.mxu0 0.0
          %1982 = vmatprep.subr.mxu0 0.0
          %1983 = vmatpush2.msra.mxu0 0.0
          %1984 = vmatprep.subr.mxu0 0.0
          %1985 = vmatpush2.msra.mxu0 0.0
          %1986 = vmatprep.subr.mxu0 0.0
          %1987 = vmatpush2.msra.mxu0 0.0
          %1988 = vmatprep.subr.mxu0 0.0
          %1989 = vmatpush2.msra.mxu0 0.0
          %1990 = vmatprep.subr.mxu0 0.0
          %1991 = vmatpush2.msra.mxu0 0.0
          %1992 = vmatprep.subr.mxu0 0.0
          %1993 = vmatpush2.msra.mxu0 0.0
          %1994 = vmatprep.subr.mxu0 0.0
          %1995 = vmatpush2.msra.mxu0 0.0
          %1996 = vmatprep.subr.mxu0 0.0
          %1997 = vmatpush2.msra.mxu0 0.0
          %1998 = vmatprep.subr.mxu0 0.0
          %1999 = vmatpush2.msra.mxu0 0.0
          %2000 = vmatprep.subr.mxu0 0.0
          %2001 = vmatpush2.msra.mxu0 0.0
          %2002 = vmatprep.subr.mxu0 0.0
          %2003 = vmatpush2.msra.mxu0 0.0
          %2004 = vmatprep.subr.mxu0 0.0
          %2005 = vmatpush2.msra.mxu0 0.0
          %2006 = vmatprep.subr.mxu0 0.0
          %2007 = vmatpush2.msra.mxu0 0.0
          %2008 = vmatprep.subr.mxu0 0.0
          %2009 = vmatpush2.msra.mxu0 0.0
          %2010 = vmatprep.mubr.f32.mxu0 0.0
          %2011 = vmatmul.mubr.f32.gmra.mxu0 %v1944
          %v2012 = vpop.f32.mrf.mxu0
          %v2013 = vadd.f32 0.0, %v2012
          %v2014 = vpop.f32.mrf.mxu0
          %2015 = vdwg.mxu0
          %2016 = vrot.lane.b32.xlu0 %v786, 64
          %v2017 = vpop.permute.xlu0 %2016
          %v2020 = vsel %vm789, %v1483, 0
          %2022 = vmatprep.subr.mxu0 0.0
          %2023 = vmatpush1.msra.mxu0 0.0
          %2024 = vmatprep.subr.mxu0 0.0
          %2025 = vmatpush1.msra.mxu0 0.0
          %2026 = vmatprep.subr.mxu0 0.0
          %2027 = vmatpush1.msra.mxu0 0.0
          %2028 = vmatprep.subr.mxu0 0.0
          %2029 = vmatpush1.msra.mxu0 0.0
          %2030 = vmatprep.subr.mxu0 0.0
          %2031 = vmatpush1.msra.mxu0 0.0
          %2032 = vmatprep.subr.mxu0 0.0
          %2033 = vmatpush1.msra.mxu0 0.0
          %2034 = vmatprep.subr.mxu0 0.0
          %2035 = vmatpush1.msra.mxu0 0.0
          %2036 = vmatprep.subr.mxu0 0.0
          %2037 = vmatpush1.msra.mxu0 0.0
          %2038 = vmatprep.subr.mxu0 0.0
          %2039 = vmatpush1.msra.mxu0 0.0
          %2040 = vmatprep.subr.mxu0 0.0
          %2041 = vmatpush1.msra.mxu0 0.0
          %2042 = vmatprep.subr.mxu0 0.0
          %2043 = vmatpush1.msra.mxu0 0.0
          %2044 = vmatprep.subr.mxu0 0.0
          %2045 = vmatpush1.msra.mxu0 0.0
          %2046 = vmatprep.subr.mxu0 0.0
          %2047 = vmatpush1.msra.mxu0 0.0
          %2048 = vmatprep.subr.mxu0 0.0
          %2049 = vmatpush1.msra.mxu0 0.0
          %2050 = vmatprep.subr.mxu0 0.0
          %2051 = vmatpush1.msra.mxu0 0.0
          %2052 = vmatprep.subr.mxu0 0.0
          %2053 = vmatpush1.msra.mxu0 %v2017
          %2054 = vmatprep.subr.mxu0 0.0
          %2055 = vmatpush2.msra.mxu0 0.0
          %2056 = vmatprep.subr.mxu0 0.0
          %2057 = vmatpush2.msra.mxu0 0.0
          %2058 = vmatprep.subr.mxu0 0.0
          %2059 = vmatpush2.msra.mxu0 0.0
          %2060 = vmatprep.subr.mxu0 0.0
          %2061 = vmatpush2.msra.mxu0 0.0
          %2062 = vmatprep.subr.mxu0 0.0
          %2063 = vmatpush2.msra.mxu0 0.0
          %2064 = vmatprep.subr.mxu0 0.0
          %2065 = vmatpush2.msra.mxu0 0.0
          %2066 = vmatprep.subr.mxu0 0.0
          %2067 = vmatpush2.msra.mxu0 0.0
          %2068 = vmatprep.subr.mxu0 0.0
          %2069 = vmatpush2.msra.mxu0 0.0
          %2070 = vmatprep.subr.mxu0 0.0
          %2071 = vmatpush2.msra.mxu0 0.0
          %2072 = vmatprep.subr.mxu0 0.0
          %2073 = vmatpush2.msra.mxu0 0.0
          %2074 = vmatprep.subr.mxu0 0.0
          %2075 = vmatpush2.msra.mxu0 0.0
          %2076 = vmatprep.subr.mxu0 0.0
          %2077 = vmatpush2.msra.mxu0 0.0
          %2078 = vmatprep.subr.mxu0 0.0
          %2079 = vmatpush2.msra.mxu0 0.0
          %2080 = vmatprep.subr.mxu0 0.0
          %2081 = vmatpush2.msra.mxu0 0.0
          %2082 = vmatprep.subr.mxu0 0.0
          %2083 = vmatpush2.msra.mxu0 0.0
          %2084 = vmatprep.subr.mxu0 0.0
          %2085 = vmatpush2.msra.mxu0 0.0
          %2086 = vmatprep.mubr.f32.mxu0 0.0
          %2087 = vmatmul.mubr.f32.gmra.mxu0 %v2020
          %v2088 = vpop.f32.mrf.mxu0
          %v2089 = vadd.f32 0.0, %v2088
          %v2090 = vpop.f32.mrf.mxu0
          %2091 = vdwg.mxu0
          %2094 = vrot.lane.b32.xlu0 %v1709, 8
          %v2095 = vpop.permute.xlu0 %2094
          %2096 = vrot.lane.b32.xlu0 %v1785, 8
          %v2097 = vpop.permute.xlu0 %2096
          %2102 = vrot.lane.b32.xlu0 %v1861, 16
          %v2103 = vpop.permute.xlu0 %2102
          %2104 = vrot.lane.b32.xlu0 %v1937, 16
          %v2105 = vpop.permute.xlu0 %2104
          %2110 = vrot.lane.b32.xlu0 %v2013, 24
          %v2111 = vpop.permute.xlu0 %2110
          %2112 = vrot.lane.b32.xlu0 %v2089, 24
          %v2113 = vpop.permute.xlu0 %2112
          %v2116 = vsel %vm789, %v1557, %v2095
          %v2117 = vsel %vm789, %v1633, %v2097
          %vm2118 = vcmask 130048
          %v2119 = vsel %vm2118, %v2116, %v2103
          %v2120 = vsel %vm2118, %v2117, %v2105
          %vm2121 = vcmask 195584
          %v2122 = vsel %vm2121, %v2119, %v2111
          %v2123 = vsel %vm2121, %v2120, %v2113
          %v2124 = vld [vmem:[%s621] sm:$0xff]
          %v2125 = vld [vmem:[%s621 + $0x8] sm:$0xff]
          %v2126 = vld [vmem:[%s621 + $0x10] sm:$0xff]
          %v2127 = vld [vmem:[%s621 + $0x18] sm:$0xff]
          %v2128 = vld [vmem:[%s624] sm:$0x1]
          %v2130 = vlaneseq
          %v2131 = vshrl.u32 %v2130, 7
          %v2132 = vsub.s32 0, %v2131
          %v2133 = vrot.slane %v2128, %v2132
          %v2136 = vsel %vm691, %v2122, 0
          %v2139 = vsel %vm691, %v2123, 0
          %2141 = vmatprep.subr.mxu0 0.0
          %2142 = vmatpush1.msra.mxu0 0.0
          %2143 = vmatprep.subr.mxu0 0.0
          %2144 = vmatpush1.msra.mxu0 0.0
          %2145 = vmatprep.subr.mxu0 0.0
          %2146 = vmatpush1.msra.mxu0 0.0
          %2147 = vmatprep.subr.mxu0 0.0
          %2148 = vmatpush1.msra.mxu0 0.0
          %2149 = vmatprep.subr.mxu0 0.0
          %2150 = vmatpush1.msra.mxu0 0.0
          %2151 = vmatprep.subr.mxu0 0.0
          %2152 = vmatpush1.msra.mxu0 0.0
          %2153 = vmatprep.subr.mxu0 0.0
          %2154 = vmatpush1.msra.mxu0 0.0
          %2155 = vmatprep.subr.mxu0 0.0
          %2156 = vmatpush1.msra.mxu0 0.0
          %2157 = vmatprep.subr.mxu0 0.0
          %2158 = vmatpush1.msra.mxu0 0.0
          %2159 = vmatprep.subr.mxu0 0.0
          %2160 = vmatpush1.msra.mxu0 0.0
          %2161 = vmatprep.subr.mxu0 0.0
          %2162 = vmatpush1.msra.mxu0 0.0
          %2163 = vmatprep.subr.mxu0 0.0
          %2164 = vmatpush1.msra.mxu0 0.0
          %2165 = vmatprep.subr.mxu0 0.0
          %2166 = vmatpush1.msra.mxu0 %v2127
          %2167 = vmatprep.subr.mxu0 0.0
          %2168 = vmatpush1.msra.mxu0 %v2126
          %2169 = vmatprep.subr.mxu0 0.0
          %2170 = vmatpush1.msra.mxu0 %v2125
          %2171 = vmatprep.subr.mxu0 0.0
          %2172 = vmatpush1.msra.mxu0 %v2124
          %2173 = vmatprep.subr.mxu0 0.0
          %2174 = vmatpush2.msra.mxu0 0.0
          %2175 = vmatprep.subr.mxu0 0.0
          %2176 = vmatpush2.msra.mxu0 0.0
          %2177 = vmatprep.subr.mxu0 0.0
          %2178 = vmatpush2.msra.mxu0 0.0
          %2179 = vmatprep.subr.mxu0 0.0
          %2180 = vmatpush2.msra.mxu0 0.0
          %2181 = vmatprep.subr.mxu0 0.0
          %2182 = vmatpush2.msra.mxu0 0.0
          %2183 = vmatprep.subr.mxu0 0.0
          %2184 = vmatpush2.msra.mxu0 0.0
          %2185 = vmatprep.subr.mxu0 0.0
          %2186 = vmatpush2.msra.mxu0 0.0
          %2187 = vmatprep.subr.mxu0 0.0
          %2188 = vmatpush2.msra.mxu0 0.0
          %2189 = vmatprep.subr.mxu0 0.0
          %2190 = vmatpush2.msra.mxu0 0.0
          %2191 = vmatprep.subr.mxu0 0.0
          %2192 = vmatpush2.msra.mxu0 0.0
          %2193 = vmatprep.subr.mxu0 0.0
          %2194 = vmatpush2.msra.mxu0 0.0
          %2195 = vmatprep.subr.mxu0 0.0
          %2196 = vmatpush2.msra.mxu0 0.0
          %2197 = vmatprep.subr.mxu0 0.0
          %2198 = vmatpush2.msra.mxu0 0.0
          %2199 = vmatprep.subr.mxu0 0.0
          %2200 = vmatpush2.msra.mxu0 0.0
          %2201 = vmatprep.subr.mxu0 0.0
          %2202 = vmatpush2.msra.mxu0 0.0
          %2203 = vmatprep.subr.mxu0 0.0
          %2204 = vmatpush2.msra.mxu0 0.0
          %2205 = vmatprep.mubr.f32.mxu0 0.0
          %2206 = vmatmul.mubr.f32.gmra.mxu0 %v2136
          %v2207 = vpop.f32.mrf.mxu0
          %v2208 = vadd.f32 %v2133, %v2207
          %v2209 = vpop.f32.mrf.mxu0
          %2210 = vmatprep.mubr.f32.mxu0 0.0
          %2211 = vmatmul.mubr.f32.gmra.mxu0 %v2139
          %v2212 = vpop.f32.mrf.mxu0
          %v2213 = vadd.f32 %v2133, %v2212
          %v2214 = vpop.f32.mrf.mxu0
          %2215 = vdwg.mxu0
          %v2216 = vadd.f32 %v678, %v2208
          %v2217 = vadd.f32 %v679, %v2213
          %v2218 = vld [vmem:[%s627] sm:$0x1]
          %v2219 = vld [vmem:[%s630] sm:$0x1]
          %v2220 = vsel %vm691, %v2216, 0.0
          %2221 = vadd.xlane.f32.xlu0 %v2220
          %v2222 = vpop.xlane.xlu0 %2221
          %v2223 = vsel %vm691, %v2217, 0.0
          %2224 = vadd.xlane.f32.xlu0 %v2223
          %v2225 = vpop.xlane.xlu0 %2224
          %v2226 = vrcp.pop 32.0
          %v2227 = vmul.f32 %v2222, %v2226
          %v2228 = vmul.f32 %v2225, %v2226
          %v2229 = vmul.f32 %v2216, %v2216
          %v2230 = vmul.f32 %v2217, %v2217
          %v2231 = vsel %vm691, %v2229, 0.0
          %2232 = vadd.xlane.f32.xlu0 %v2231
          %v2233 = vpop.xlane.xlu0 %2232
          %v2234 = vsel %vm691, %v2230, 0.0
          %2235 = vadd.xlane.f32.xlu0 %v2234
          %v2236 = vpop.xlane.xlu0 %2235
          %v2237 = vmul.f32 %v2233, %v2226
          %v2238 = vmul.f32 %v2236, %v2226
          %v2239 = vmul.f32 %v2227, %v2227
          %v2240 = vmul.f32 %v2228, %v2228
          %v2241 = vsub.f32 %v2237, %v2239
          %v2242 = vsub.f32 %v2238, %v2240
          %v2243 = vsub.f32 %v2216, %v2227
          %v2244 = vsub.f32 %v2217, %v2228
          %v2245 = vadd.f32 %v2241, 1e-05
          %v2246 = vadd.f32 %v2242, 1e-05
          %v2247 = vrsqrt.pop %v2245
          %v2248 = vrsqrt.pop %v2246
          %v2249 = vmul.f32 %v2243, %v2247
          %v2250 = vmul.f32 %v2244, %v2248
          %v2252 = vlaneseq
          %v2253 = vshrl.u32 %v2252, 7
          %v2254 = vsub.s32 0, %v2253
          %v2255 = vrot.slane %v2218, %v2254
          %v2257 = vmul.f32 %v2249, %v2255
          %v2258 = vmul.f32 %v2250, %v2255
          %v2260 = vlaneseq
          %v2261 = vshrl.u32 %v2260, 7
          %v2262 = vsub.s32 0, %v2261
          %v2263 = vrot.slane %v2219, %v2262
          %v2265 = vadd.f32 %v2257, %v2263
          %v2266 = vadd.f32 %v2258, %v2263
          %2267 = vst.msk [vmem:[#allocation2] sm:$0xff] %vm691, %v2265
          %2268 = vst.msk [vmem:[#allocation2 + $0x8] sm:$0xff] %vm691, %v2266
          %2269 = vst.msk [vmem:[#allocation3] sm:$0xff] %vm691, 0.0
          %2270 = vst.msk [vmem:[#allocation3 + $0x8] sm:$0xff] %vm691, 0.0
        $region84: #{tpu_custom_call.1} parent=71 // pred_fallthru
          _
        %v2271 = vld [vmem:[#allocation2] sm:$0xff]
        %v2272 = vld [vmem:[#allocation2 + $0x8] sm:$0xff]
        %v2273 = vld [vmem:[%s638] sm:$0xff]
        %v2274 = vld [vmem:[%s638 + $0x8] sm:$0xff]
        %v2275 = vld [vmem:[%s638 + $0x10] sm:$0xff]
        %v2276 = vld [vmem:[%s638 + $0x18] sm:$0xff]
        %v2277 = vld [vmem:[%s644] sm:$0x1]
        %v2279 = vlaneseq
        %v2280 = vshrl.u32 %v2279, 7
        %v2281 = vsub.s32 0, %v2280
        %v2282 = vrot.slane %v2277, %v2281
        %vm2284 = vcmask 261120
        %v2286 = vsel %vm2284, %v2271, 0
        %v2289 = vsel %vm2284, %v2272, 0
        %2291 = vmatprep.subr.mxu0 0.0
        %2292 = vmatpush1.msra.mxu0 0.0
        %2293 = vmatprep.subr.mxu0 0.0
        %2294 = vmatpush1.msra.mxu0 0.0
        %2295 = vmatprep.subr.mxu0 0.0
        %2296 = vmatpush1.msra.mxu0 0.0
        %2297 = vmatprep.subr.mxu0 0.0
        %2298 = vmatpush1.msra.mxu0 0.0
        %2299 = vmatprep.subr.mxu0 0.0
        %2300 = vmatpush1.msra.mxu0 0.0
        %2301 = vmatprep.subr.mxu0 0.0
        %2302 = vmatpush1.msra.mxu0 0.0
        %2303 = vmatprep.subr.mxu0 0.0
        %2304 = vmatpush1.msra.mxu0 0.0
        %2305 = vmatprep.subr.mxu0 0.0
        %2306 = vmatpush1.msra.mxu0 0.0
        %2307 = vmatprep.subr.mxu0 0.0
        %2308 = vmatpush1.msra.mxu0 0.0
        %2309 = vmatprep.subr.mxu0 0.0
        %2310 = vmatpush1.msra.mxu0 0.0
        %2311 = vmatprep.subr.mxu0 0.0
        %2312 = vmatpush1.msra.mxu0 0.0
        %2313 = vmatprep.subr.mxu0 0.0
        %2314 = vmatpush1.msra.mxu0 0.0
        %2315 = vmatprep.subr.mxu0 0.0
        %2316 = vmatpush1.msra.mxu0 %v2276
        %2317 = vmatprep.subr.mxu0 0.0
        %2318 = vmatpush1.msra.mxu0 %v2275
        %2319 = vmatprep.subr.mxu0 0.0
        %2320 = vmatpush1.msra.mxu0 %v2274
        %2321 = vmatprep.subr.mxu0 0.0
        %2322 = vmatpush1.msra.mxu0 %v2273
        %2323 = vmatprep.subr.mxu0 0.0
        %2324 = vmatpush2.msra.mxu0 0.0
        %2325 = vmatprep.subr.mxu0 0.0
        %2326 = vmatpush2.msra.mxu0 0.0
        %2327 = vmatprep.subr.mxu0 0.0
        %2328 = vmatpush2.msra.mxu0 0.0
        %2329 = vmatprep.subr.mxu0 0.0
        %2330 = vmatpush2.msra.mxu0 0.0
        %2331 = vmatprep.subr.mxu0 0.0
        %2332 = vmatpush2.msra.mxu0 0.0
        %2333 = vmatprep.subr.mxu0 0.0
        %2334 = vmatpush2.msra.mxu0 0.0
        %2335 = vmatprep.subr.mxu0 0.0
        %2336 = vmatpush2.msra.mxu0 0.0
        %2337 = vmatprep.subr.mxu0 0.0
        %2338 = vmatpush2.msra.mxu0 0.0
        %2339 = vmatprep.subr.mxu0 0.0
        %2340 = vmatpush2.msra.mxu0 0.0
        %2341 = vmatprep.subr.mxu0 0.0
        %2342 = vmatpush2.msra.mxu0 0.0
        %2343 = vmatprep.subr.mxu0 0.0
        %2344 = vmatpush2.msra.mxu0 0.0
        %2345 = vmatprep.subr.mxu0 0.0
        %2346 = vmatpush2.msra.mxu0 0.0
        %2347 = vmatprep.subr.mxu0 0.0
        %2348 = vmatpush2.msra.mxu0 0.0
        %2349 = vmatprep.subr.mxu0 0.0
        %2350 = vmatpush2.msra.mxu0 0.0
        %2351 = vmatprep.subr.mxu0 0.0
        %2352 = vmatpush2.msra.mxu0 0.0
        %2353 = vmatprep.subr.mxu0 0.0
        %2354 = vmatpush2.msra.mxu0 0.0
        %2355 = vmatprep.mubr.f32.mxu0 0.0
        %2356 = vmatmul.mubr.f32.gmra.mxu0 %v2286
        %v2357 = vpop.f32.mrf.mxu0
        %v2358 = vadd.f32 %v2282, %v2357
        %v2359 = vpop.f32.mrf.mxu0
        %2360 = vmatprep.mubr.f32.mxu0 0.0
        %2361 = vmatmul.mubr.f32.gmra.mxu0 %v2289
        %v2362 = vpop.f32.mrf.mxu0
        %v2363 = vadd.f32 %v2282, %v2362
        %v2364 = vpop.f32.mrf.mxu0
        %2365 = vdwg.mxu0
        %v2366 = vmax.f32 %v2358, 0.0
        %v2367 = vmax.f32 %v2363, 0.0
        %v2368 = vld [vmem:[#allocation3] sm:$0xff]
        %v2369 = vld [vmem:[#allocation3 + $0x8] sm:$0xff]
        %v2370 = vld [vmem:[%s653] sm:$0xff]
        %v2371 = vld [vmem:[%s653 + $0x8] sm:$0xff]
        %v2372 = vld [vmem:[%s653 + $0x10] sm:$0xff]
        %v2373 = vld [vmem:[%s653 + $0x18] sm:$0xff]
        %v2374 = vld [vmem:[%s653 + $0x20] sm:$0xff]
        %v2375 = vld [vmem:[%s653 + $0x28] sm:$0xff]
        %v2376 = vld [vmem:[%s653 + $0x30] sm:$0xff]
        %v2377 = vld [vmem:[%s653 + $0x38] sm:$0xff]
        %vm2378 = vcmask 523264
        %v2380 = vsel %vm2378, %v2366, 0
        %v2383 = vsel %vm2378, %v2367, 0
        %2385 = vmatprep.subr.mxu0 0.0
        %2386 = vmatpush1.msra.mxu0 0.0
        %2387 = vmatprep.subr.mxu0 0.0
        %2388 = vmatpush1.msra.mxu0 0.0
        %2389 = vmatprep.subr.mxu0 0.0
        %2390 = vmatpush1.msra.mxu0 0.0
        %2391 = vmatprep.subr.mxu0 0.0
        %2392 = vmatpush1.msra.mxu0 0.0
        %2393 = vmatprep.subr.mxu0 0.0
        %2394 = vmatpush1.msra.mxu0 0.0
        %2395 = vmatprep.subr.mxu0 0.0
        %2396 = vmatpush1.msra.mxu0 0.0
        %2397 = vmatprep.subr.mxu0 0.0
        %2398 = vmatpush1.msra.mxu0 0.0
        %2399 = vmatprep.subr.mxu0 0.0
        %2400 = vmatpush1.msra.mxu0 0.0
        %2401 = vmatprep.subr.mxu0 0.0
        %2402 = vmatpush1.msra.mxu0 %v2377
        %2403 = vmatprep.subr.mxu0 0.0
        %2404 = vmatpush1.msra.mxu0 %v2376
        %2405 = vmatprep.subr.mxu0 0.0
        %2406 = vmatpush1.msra.mxu0 %v2375
        %2407 = vmatprep.subr.mxu0 0.0
        %2408 = vmatpush1.msra.mxu0 %v2374
        %2409 = vmatprep.subr.mxu0 0.0
        %2410 = vmatpush1.msra.mxu0 %v2373
        %2411 = vmatprep.subr.mxu0 0.0
        %2412 = vmatpush1.msra.mxu0 %v2372
        %2413 = vmatprep.subr.mxu0 0.0
        %2414 = vmatpush1.msra.mxu0 %v2371
        %2415 = vmatprep.subr.mxu0 0.0
        %2416 = vmatpush1.msra.mxu0 %v2370
        %2417 = vmatprep.subr.mxu0 0.0
        %2418 = vmatpush2.msra.mxu0 0.0
        %2419 = vmatprep.subr.mxu0 0.0
        %2420 = vmatpush2.msra.mxu0 0.0
        %2421 = vmatprep.subr.mxu0 0.0
        %2422 = vmatpush2.msra.mxu0 0.0
        %2423 = vmatprep.subr.mxu0 0.0
        %2424 = vmatpush2.msra.mxu0 0.0
        %2425 = vmatprep.subr.mxu0 0.0
        %2426 = vmatpush2.msra.mxu0 0.0
        %2427 = vmatprep.subr.mxu0 0.0
        %2428 = vmatpush2.msra.mxu0 0.0
        %2429 = vmatprep.subr.mxu0 0.0
        %2430 = vmatpush2.msra.mxu0 0.0
        %2431 = vmatprep.subr.mxu0 0.0
        %2432 = vmatpush2.msra.mxu0 0.0
        %2433 = vmatprep.subr.mxu0 0.0
        %2434 = vmatpush2.msra.mxu0 0.0
        %2435 = vmatprep.subr.mxu0 0.0
        %2436 = vmatpush2.msra.mxu0 0.0
        %2437 = vmatprep.subr.mxu0 0.0
        %2438 = vmatpush2.msra.mxu0 0.0
        %2439 = vmatprep.subr.mxu0 0.0
        %2440 = vmatpush2.msra.mxu0 0.0
        %2441 = vmatprep.subr.mxu0 0.0
        %2442 = vmatpush2.msra.mxu0 0.0
        %2443 = vmatprep.subr.mxu0 0.0
        %2444 = vmatpush2.msra.mxu0 0.0
        %2445 = vmatprep.subr.mxu0 0.0
        %2446 = vmatpush2.msra.mxu0 0.0
        %2447 = vmatprep.subr.mxu0 0.0
        %2448 = vmatpush2.msra.mxu0 0.0
        %2449 = vmatprep.mubr.f32.mxu0 0.0
        %2450 = vmatmul.mubr.f32.gmra.mxu0 %v2380
        %v2451 = vpop.f32.mrf.mxu0
        %v2452 = vadd.f32 0.0, %v2451
        %v2453 = vpop.f32.mrf.mxu0
        %2454 = vmatprep.mubr.f32.mxu0 0.0
        %2455 = vmatmul.mubr.f32.gmra.mxu0 %v2383
        %v2456 = vpop.f32.mrf.mxu0
        %v2457 = vadd.f32 0.0, %v2456
        %v2458 = vpop.f32.mrf.mxu0
        %2459 = vdwg.mxu0
        %v2460 = vadd.f32 %v2368, %v2452
        %v2461 = vadd.f32 %v2369, %v2457
        %2462 = vst.msk [vmem:[#allocation3] sm:$0xff] %vm2284, %v2460
        %2463 = vst.msk [vmem:[#allocation3 + $0x8] sm:$0xff] %vm2284, %v2461
        // Predicated region
        $region85: #{tpu_custom_call.1} parent=71 // pred_check
          %p2464 = pneg %p665
        $region86: #{tpu_custom_call.1} parent=71 // pred_check_branch
          %2466 = sbr.rel (%p2464) target = $region88
        $region87: #{tpu_custom_call.1} parent=71 // pred_region
          %v2467 = vld [vmem:[#allocation2] sm:$0xff]
          %v2468 = vld [vmem:[#allocation2 + $0x8] sm:$0xff]
          %v2469 = vld [vmem:[#allocation3] sm:$0xff]
          %v2470 = vld [vmem:[#allocation3 + $0x8] sm:$0xff]
          %v2471 = vadd.f32 %v2467, %v2469
          %v2472 = vadd.f32 %v2468, %v2470
          %v2473 = vld [vmem:[%s657] sm:$0x1]
          %v2475 = vlaneseq
          %v2476 = vshrl.u32 %v2475, 7
          %v2477 = vsub.s32 0, %v2476
          %v2478 = vrot.slane %v2473, %v2477
          %v2480 = vadd.f32 %v2471, %v2478
          %v2481 = vadd.f32 %v2472, %v2478
          %v2482 = vld [vmem:[%s660] sm:$0x1]
          %v2483 = vld [vmem:[%s663] sm:$0x1]
          %v2484 = vsel %vm2284, %v2480, 0.0
          %2485 = vadd.xlane.f32.xlu0 %v2484
          %v2486 = vpop.xlane.xlu0 %2485
          %v2487 = vsel %vm2284, %v2481, 0.0
          %2488 = vadd.xlane.f32.xlu0 %v2487
          %v2489 = vpop.xlane.xlu0 %2488
          %v2490 = vrcp.pop 32.0
          %v2491 = vmul.f32 %v2486, %v2490
          %v2492 = vmul.f32 %v2489, %v2490
          %v2493 = vmul.f32 %v2480, %v2480
          %v2494 = vmul.f32 %v2481, %v2481
          %v2495 = vsel %vm2284, %v2493, 0.0
          %2496 = vadd.xlane.f32.xlu0 %v2495
          %v2497 = vpop.xlane.xlu0 %2496
          %v2498 = vsel %vm2284, %v2494, 0.0
          %2499 = vadd.xlane.f32.xlu0 %v2498
          %v2500 = vpop.xlane.xlu0 %2499
          %v2501 = vmul.f32 %v2497, %v2490
          %v2502 = vmul.f32 %v2500, %v2490
          %v2503 = vmul.f32 %v2491, %v2491
          %v2504 = vmul.f32 %v2492, %v2492
          %v2505 = vsub.f32 %v2501, %v2503
          %v2506 = vsub.f32 %v2502, %v2504
          %v2507 = vsub.f32 %v2480, %v2491
          %v2508 = vsub.f32 %v2481, %v2492
          %v2509 = vadd.f32 %v2505, 1e-05
          %v2510 = vadd.f32 %v2506, 1e-05
          %v2511 = vrsqrt.pop %v2509
          %v2512 = vrsqrt.pop %v2510
          %v2513 = vmul.f32 %v2507, %v2511
          %v2514 = vmul.f32 %v2508, %v2512
          %v2516 = vlaneseq
          %v2517 = vshrl.u32 %v2516, 7
          %v2518 = vsub.s32 0, %v2517
          %v2519 = vrot.slane %v2482, %v2518
          %v2521 = vmul.f32 %v2513, %v2519
          %v2522 = vmul.f32 %v2514, %v2519
          %v2524 = vlaneseq
          %v2525 = vshrl.u32 %v2524, 7
          %v2526 = vsub.s32 0, %v2525
          %v2527 = vrot.slane %v2483, %v2526
          %v2529 = vadd.f32 %v2521, %v2527
          %v2530 = vadd.f32 %v2522, %v2527
          %2531 = vst.msk [vmem:[#allocation2] sm:$0xff] %vm2284, %v2529
          %2532 = vst.msk [vmem:[#allocation2 + $0x8] sm:$0xff] %vm2284, %v2530
        $region88: #{tpu_custom_call.1} parent=71 // pred_fallthru
          _
        %p2533 = scmp.eq.s32.totalorder %s30, 1
        %p2534 = pnand %p665, %p2533
        %p2535 = pneg %p2534
        // Predicated region
        $region89: #{tpu_custom_call.1} parent=71 // pred_check
          _
        $region90: #{tpu_custom_call.1} parent=71 // pred_check_branch
          %2537 = sbr.rel (%p2534) target = $region92
        $region91: #{tpu_custom_call.1} parent=71 // pred_region
          %v2538 = vld [vmem:[#allocation2] sm:$0xff]
          %v2539 = vld [vmem:[#allocation2 + $0x8] sm:$0xff]
          %2540 = vst.msk [vmem:[#allocation7] sm:$0xff] %vm2284, %v2538
          %2541 = vst.msk [vmem:[#allocation7 + $0x8] sm:$0xff] %vm2284, %v2539
        $region92: #{tpu_custom_call.1} parent=71 // pred_fallthru
          _
        // Predicated region
        $region93: #{tpu_custom_call.1} parent=71 // pred_check
          %p2542 = pneg %p390
        $region94: #{tpu_custom_call.1} parent=71 // pred_check_branch
          %2544 = sbr.rel (%p2542) target = $region96
        $region95: #{tpu_custom_call.1} parent=71 // pred_region
          %s2546 = ssub.s32 256, 256
          %2547 = vsyncadd [#allocation6], %s2546
          %s2548 = sshll.u32 [#allocation7], 4
          %s2549 = int_to_ptr.vmem [resolvable:$true] %s2548
          %2554 = dma.vmem_to_hbm [thread:$0]  %s2549, 256, %s13, [#allocation6], 128, 128, 8
        $region96: #{tpu_custom_call.1} parent=71 // pred_fallthru
          _
        // Predicated region
        $region97: #{tpu_custom_call.1} parent=71 // pred_check
          %p2555 = pneg %p390
        $region98: #{tpu_custom_call.1} parent=71 // pred_check_branch
          %2557 = sbr.rel (%p2555) target = $region100
        $region99: #{tpu_custom_call.1} parent=71 // pred_region
          %2558 = dma.done [#allocation6], 256
        $region100: #{tpu_custom_call.1} parent=71 // pred_fallthru
          _
      $region72: #{tpu_custom_call.1} parent=5 // pred_fallthru
        _
      %p2559 = scmp.le.s32.totalorder 2, %s21
      // Predicated region
      $region101: #{tpu_custom_call.1} parent=5 // pred_check
        %p2560 = pneg %p2559
      $region102: #{tpu_custom_call.1} parent=5 // pred_check_branch
        %2562 = sbr.rel (%p2560) target = $region104
      $region103: #{tpu_custom_call.1} parent=5 // pred_region
        %s2563 = ssub.s32 %s21, 2
      $region104: #{tpu_custom_call.1} parent=5 // pred_fallthru
        _
    $region6: #{tpu_custom_call.1} parent=1 // loop_footer
      %s25 = sadd.s32 1, %s21
    $region7: #{tpu_custom_call.1} parent=1 // loop_footer_branch
      %20 = sbr.rel target = $region3
    $region8: #{tpu_custom_call.1} parent=1 // loop_exit
      _
    %2564 = vsyncpa [#allocation5], 1
    %s2565 = scalar_lea.sflag [#allocation5], 1
    %2566 = vsyncpa %s2565, 1
    %2567 = vsyncpa [#allocation6], 1
    %s2568 = scalar_lea.sflag [#allocation6], 1
    %2569 = vsyncpa %s2568, 1

</llo_original>
